<compile_context>
chip_gen: v6e
topology: v6e:2x2x1
jax: 0.10.0
libtpu: 0.0.40
codegen_flags: <defaults>
</compile_context>

<pallas_src>
import functools

import jax
import jax.numpy as jnp
from jax.experimental import pallas as pl
from jax.experimental.pallas import tpu as pltpu


def _round_up(a: int, b: int) -> int:
    return (a + b - 1) // b * b


def _tensorcores_per_chip() -> int:
    """Best-effort TensorCores-per-chip detection (v7x: 2, v5e/v6e: 1)."""
    try:
        kind = jax.devices()[0].device_kind.lower()
    except Exception:
        return 1
    return 2 if "v7" in kind else 1


def convlstm_kernel(p_ref, c_ref, w_ref, b_ref, hc_ref):
    # p_ref  : (tm, K_pad)     bf16  im2col patches (rows = flattened B*H*W)
    # c_ref  : (tm, Chid)      f32   current cell state
    # w_ref  : (K_pad, 4*Chid) bf16  conv weight, K ordered (kh, kw, cin);
    #                                g columns pre-scaled by 2 in the wrapper
    # b_ref  : (1, 4*Chid)     f32   conv bias; g entries pre-scaled by 2
    # hc_ref : (tm, 2*Chid)          output slab [h_next | c_next]
    chid = c_ref.shape[1]

    # Single well-filled MXU matmul with f32 accumulation.
    acc = jnp.dot(p_ref[...], w_ref[...], preferred_element_type=jnp.float32)
    acc = acc + b_ref[...]                       # (1, 4*Chid) broadcast add

    # One full-(128)-lane EUP sigmoid pass. tanh(x) = 2*sigmoid(2x) - 1 and
    # the 2x is already folded into w/b for the g lanes, so no iota/select.
    s = jax.nn.sigmoid(acc)
    i = s[:, 0 * chid:1 * chid]
    f = s[:, 1 * chid:2 * chid]
    o = s[:, 2 * chid:3 * chid]
    g = 2.0 * s[:, 3 * chid:4 * chid] - 1.0

    c_next = f * c_ref[...] + i * g
    h_next = o * jnp.tanh(c_next)

    # Lane-dense (2*Chid-wide) store; the wrapper splits h / c.
    hc_ref[...] = jnp.concatenate([h_next, c_next], axis=-1).astype(hc_ref.dtype)


@functools.partial(jax.jit, static_argnames=("kernel_size", "num_cores"))
def convlstm_cell_forward(x_nchw, h_nchw, c_nchw, weight_oihw, bias, *,
                          kernel_size, num_cores=1):
    """Runs ConvLSTMCell.forward. Inputs/outputs use the PyTorch NCHW layout."""
    kH, kW = kernel_size
    ph, pw = kH // 2, kW // 2

    B, Cin, H, W = x_nchw.shape
    Chid = h_nchw.shape[1]
    Ctot = Cin + Chid
    K = kH * kW * Ctot
    K_pad = _round_up(K, 128)          # 324 -> 384: aligned lanes, no MXU tail
    M = B * H * W

    # ---- Tile / grid selection (generation-aware, VMEM-capped) ----
    # Per-row double-buffered VMEM ~ 2*(K_pad*2 + Chid*4 + 2*Chid*4) B
    # (~2.3 KB here) -> 4096 rows stays well under even v5e's 16 MiB scoped
    # default (and v7x's tighter 64 MiB physical) while keeping the HBM
    # pipeline efficient for large M.
    ROWS_CAP = 4096
    ntiles = max(num_cores, pl.cdiv(M, ROWS_CAP))
    tm = _round_up(pl.cdiv(M, ntiles), 8)
    M_pad = tm * ntiles
    grid = (ntiles,)

    # ---- Layout plumbing (wrapper-side, no FLOPs) ----
    # NCHW -> NHWC (channels -> lanes), concat x|h, zero-pad ("same" conv).
    x = jnp.transpose(x_nchw, (0, 2, 3, 1))
    h = jnp.transpose(h_nchw, (0, 2, 3, 1))
    c = jnp.transpose(c_nchw, (0, 2, 3, 1))
    xh = jnp.concatenate([x, h], axis=-1)                       # (B, H, W, Ctot)
    xh_pad = jnp.pad(xh, ((0, 0), (ph, ph), (pw, pw), (0, 0)))

    # im2col: row (b, h, w) holds the kH*kW*Ctot receptive field, K ordered
    # (kh, kw, cin) to match the reshaped weight below.
    # TODO(synk): at production B*H*W, build the patches inside the kernel from
    # a row-tiled (padded) xh slab via shifted pl.ds views to avoid this ~9x
    # HBM traffic blow-up; at the demo shapes the wrapper HLOs dominate anyway.
    taps = [xh_pad[:, kh:kh + H, kw:kw + W, :]
            for kh in range(kH) for kw in range(kW)]
    patches = jnp.concatenate(taps, axis=-1).reshape(M, K).astype(jnp.bfloat16)
    patches = jnp.pad(patches, ((0, M_pad - M), (0, K_pad - K)))

    c_flat = c.reshape(M, Chid).astype(jnp.float32)
    c_flat = jnp.pad(c_flat, ((0, M_pad - M), (0, 0)))

    # PyTorch OIHW (4C, Ctot, kH, kW) -> (kH, kW, Ctot, 4C) -> (K, 4C).
    # Fold the g-gate's 2x (tanh via sigmoid) into weight and bias here
    # (exact in bf16: scaling by 2 only bumps the exponent).
    gate_scale = jnp.concatenate(
        [jnp.ones((3 * Chid,), jnp.float32), jnp.full((Chid,), 2.0, jnp.float32)])
    w = jnp.transpose(weight_oihw, (2, 3, 1, 0)).reshape(K, 4 * Chid)
    w = (w * gate_scale[None, :]).astype(jnp.bfloat16)
    w = jnp.pad(w, ((0, K_pad - K), (0, 0)))
    b2 = (bias * gate_scale).reshape(1, 4 * Chid).astype(jnp.float32)

    out_sds = jax.ShapeDtypeStruct((M_pad, 2 * Chid), x_nchw.dtype)

    grid_spec = pltpu.PrefetchScalarGridSpec(
        num_scalar_prefetch=0,
        grid=grid,
        in_specs=[
            pl.BlockSpec((tm, K_pad), lambda i: (i, 0)),
            pl.BlockSpec((tm, Chid), lambda i: (i, 0)),
            pl.BlockSpec((K_pad, 4 * Chid), lambda i: (0, 0)),
            pl.BlockSpec((1, 4 * Chid), lambda i: (0, 0)),
        ],
        out_specs=pl.BlockSpec((tm, 2 * Chid), lambda i: (i, 0)),
    )

    hc = pl.pallas_call(
        convlstm_kernel,
        out_shape=out_sds,
        grid_spec=grid_spec,
        compiler_params=pltpu.CompilerParams(
            dimension_semantics=("parallel",)),
    )(patches, c_flat, w, b2)

    h_flat = hc[:M, :Chid]
    c_next_flat = hc[:M, Chid:]

    # TODO(synk): if this cell runs inside a timestep scan, keep h/c in this
    # flattened (M, Chid) layout between steps and only convert NCHW<->NHWC at
    # sequence boundaries.
    h_next = jnp.transpose(h_flat.reshape(B, H, W, Chid), (0, 3, 1, 2))
    c_next = jnp.transpose(c_next_flat.reshape(B, H, W, Chid), (0, 3, 1, 2))
    return h_next, c_next


def ref_convlstm_cell(x, h, c, weight, bias, conv_dtype=jnp.float32):
    """Pure-JAX reference mirroring the PyTorch forward (NCHW).

    conv_dtype lets us also build a reference whose conv operands are rounded
    to bf16 (f32 accumulation), matching the kernel's MXU precision choice.
    """
    combined = jnp.concatenate([x, h], axis=1).astype(conv_dtype)
    conv = jax.lax.conv_general_dilated(
        combined, weight.astype(conv_dtype), window_strides=(1, 1),
        padding="SAME", dimension_numbers=("NCHW", "OIHW", "NCHW"),
        preferred_element_type=jnp.float32,
    ) + bias[None, :, None, None]
    cc_i, cc_f, cc_o, cc_g = jnp.split(conv, 4, axis=1)
    i = jax.nn.sigmoid(cc_i)
    f = jax.nn.sigmoid(cc_f)
    o = jax.nn.sigmoid(cc_o)
    g = jnp.tanh(cc_g)
    c_next = f * c + i * g
    h_next = o * jnp.tanh(c_next)
    return h_next, c_next


if __name__ == "__main__":
    # Small shapes consistent with the module: batch=2, input_dim=4,
    # hidden_dim=32, image 16x16, kernel (3,3).
    B, Cin, Chid, H, W = 2, 4, 32, 16, 16
    kH, kW = 3, 3

    key = jax.random.PRNGKey(0)
    kx, kh_, kc, kw_, kb = jax.random.split(key, 5)

    x = jax.random.normal(kx, (B, Cin, H, W), jnp.float32)
    h_cur = jax.random.normal(kh_, (B, Chid, H, W), jnp.float32)
    c_cur = jax.random.normal(kc, (B, Chid, H, W), jnp.float32)

    # Deterministic Conv2d parameters (OIHW), synthetic init.
    weight = 0.05 * jax.random.normal(
        kw_, (4 * Chid, Cin + Chid, kH, kW), jnp.float32)
    bias = 0.05 * jax.random.normal(kb, (4 * Chid,), jnp.float32)

    num_cores = _tensorcores_per_chip()

    h_next, c_next = convlstm_cell_forward(
        x, h_cur, c_cur, weight, bias, kernel_size=(kH, kW),
        num_cores=num_cores)
    jax.block_until_ready((h_next, c_next))

    # Tight structural check against a reference with the same bf16 conv
    # operand rounding (f32 accumulation).
    h_ref_bf, c_ref_bf = ref_convlstm_cell(
        x, h_cur, c_cur, weight, bias, conv_dtype=jnp.bfloat16)
    assert jnp.allclose(h_next, h_ref_bf, atol=1e-3, rtol=1e-3)
    assert jnp.allclose(c_next, c_ref_bf, atol=1e-3, rtol=1e-3)

    # End-to-end check against the full-f32 PyTorch-equivalent math; tolerance
    # consciously loosened because the kernel's conv operands are bf16.
    h_ref, c_ref = ref_convlstm_cell(x, h_cur, c_cur, weight, bias)
    assert jnp.allclose(h_next, h_ref, atol=5e-2, rtol=5e-2)
    assert jnp.allclose(c_next, c_ref, atol=5e-2, rtol=5e-2)

    print("KERNEL_OK")
</pallas_src>

<mosaic_0001>
module attributes {stable_mosaic.version = 11 : i64} {
  func.func @convlstm_kernel(%arg0: i32, %arg1: memref<512x384xbf16, #tpu.memory_space<vmem>>, %arg2: memref<512x32xf32, #tpu.memory_space<vmem>>, %arg3: memref<384x128xbf16, #tpu.memory_space<vmem>>, %arg4: memref<1x128xf32, #tpu.memory_space<vmem>>, %arg5: memref<512x64xf32, #tpu.memory_space<vmem>>) attributes {dimension_semantics = [#tpu.dimension_semantics<parallel>], iteration_bounds = array<i64: 1>, scalar_prefetch = 0 : i64, scratch_operands = 0 : i64, tpu.core_type = #tpu.core_type<tc>, window_params = [{transform_indices = @transform_0, window_bounds = array<i64: 512, 384>}, {transform_indices = @transform_1, window_bounds = array<i64: 512, 32>}, {pipeline_mode = #tpu.pipeline_mode<synchronous>, transform_indices = @transform_2, window_bounds = array<i64: 384, 128>}, {pipeline_mode = #tpu.pipeline_mode<synchronous>, transform_indices = @transform_3, window_bounds = array<i64: 1, 128>}, {transform_indices = @transform_4, window_bounds = array<i64: 512, 64>}]} {
    %c0 = arith.constant 0 : index
    %c0_0 = arith.constant 0 : index
    %0 = vector.load %arg1[%c0, %c0_0] : memref<512x384xbf16, #tpu.memory_space<vmem>>, vector<512x384xbf16>
    %c0_1 = arith.constant 0 : index
    %c0_2 = arith.constant 0 : index
    %1 = vector.load %arg3[%c0_1, %c0_2] : memref<384x128xbf16, #tpu.memory_space<vmem>>, vector<384x128xbf16>
    %cst = arith.constant dense<0.000000e+00> : vector<512x128xf32>
    %2 = tpu.matmul %0, %1, %cst {dimension_numbers = #tpu.dot_dimension_numbers<[1], [0], [0], [1], [0, 0, 1, 1], [], []>} : vector<512x384xbf16>, vector<384x128xbf16>, vector<512x128xf32> -> vector<512x128xf32>
    %c0_3 = arith.constant 0 : index
    %c0_4 = arith.constant 0 : index
    %3 = vector.load %arg4[%c0_3, %c0_4] : memref<1x128xf32, #tpu.memory_space<vmem>>, vector<1x128xf32>
    %4 = vector.broadcast %3 : vector<1x128xf32> to vector<512x128xf32>
    %5 = arith.addf %2, %4 : vector<512x128xf32>
    %6 = arith.negf %5 : vector<512x128xf32>
    %7 = math.exp %6 : vector<512x128xf32>
    %cst_5 = arith.constant 1.000000e+00 : f32
    %8 = vector.broadcast %cst_5 : f32 to vector<512x128xf32>
    %9 = arith.addf %8, %7 : vector<512x128xf32>
    %10 = arith.divf %8, %9 : vector<512x128xf32>
    %11 = vector.extract_strided_slice %10 {offsets = [0, 0], sizes = [512, 32], strides = [1, 1]} : vector<512x128xf32> to vector<512x32xf32>
    %12 = vector.extract_strided_slice %10 {offsets = [0, 32], sizes = [512, 32], strides = [1, 1]} : vector<512x128xf32> to vector<512x32xf32>
    %13 = vector.extract_strided_slice %10 {offsets = [0, 64], sizes = [512, 32], strides = [1, 1]} : vector<512x128xf32> to vector<512x32xf32>
    %14 = vector.extract_strided_slice %10 {offsets = [0, 96], sizes = [512, 32], strides = [1, 1]} : vector<512x128xf32> to vector<512x32xf32>
    %cst_6 = arith.constant 2.000000e+00 : f32
    %15 = vector.broadcast %cst_6 : f32 to vector<512x32xf32>
    %16 = arith.mulf %15, %14 : vector<512x32xf32>
    %cst_7 = arith.constant 1.000000e+00 : f32
    %17 = vector.broadcast %cst_7 : f32 to vector<512x32xf32>
    %18 = arith.subf %16, %17 : vector<512x32xf32>
    %c0_8 = arith.constant 0 : index
    %c0_9 = arith.constant 0 : index
    %19 = vector.load %arg2[%c0_8, %c0_9] : memref<512x32xf32, #tpu.memory_space<vmem>>, vector<512x32xf32>
    %20 = arith.mulf %12, %19 : vector<512x32xf32>
    %21 = arith.mulf %11, %18 : vector<512x32xf32>
    %22 = arith.addf %20, %21 : vector<512x32xf32>
    %23 = math.tanh %22 : vector<512x32xf32>
    %24 = arith.mulf %13, %23 : vector<512x32xf32>
    %25 = tpu.concatenate %24, %22 in 1 : vector<512x32xf32>, vector<512x32xf32> -> vector<512x64xf32>
    %c0_10 = arith.constant 0 : index
    %c0_11 = arith.constant 0 : index
    %26 = vector.load %arg5[%c0_10, %c0_11] : memref<512x64xf32, #tpu.memory_space<vmem>>, vector<512x64xf32>
    tpu.vector_store %arg5[%c0_10, %c0_11], %25 {strides = array<i32>} : memref<512x64xf32, #tpu.memory_space<vmem>>, vector<512x64xf32>,
    return
  }
  func.func @transform_0(%arg0: i32) -> (i32, i32) {
    %c0_i32 = arith.constant 0 : i32
    %c0_i32_0 = arith.constant 0 : i32
    return %arg0, %c0_i32 : i32, i32
  }
  func.func @transform_1(%arg0: i32) -> (i32, i32) {
    %c0_i32 = arith.constant 0 : i32
    %c0_i32_0 = arith.constant 0 : i32
    return %arg0, %c0_i32 : i32, i32
  }
  func.func @transform_2(%arg0: i32) -> (i32, i32) {
    %c0_i32 = arith.constant 0 : i32
    %c0_i32_0 = arith.constant 0 : i32
    %c0_i32_1 = arith.constant 0 : i32
    return %c0_i32, %c0_i32_0 : i32, i32
  }
  func.func @transform_3(%arg0: i32) -> (i32, i32) {
    %c0_i32 = arith.constant 0 : i32
    %c0_i32_0 = arith.constant 0 : i32
    %c0_i32_1 = arith.constant 0 : i32
    return %c0_i32, %c0_i32_0 : i32, i32
  }
  func.func @transform_4(%arg0: i32) -> (i32, i32) {
    %c0_i32 = arith.constant 0 : i32
    %c0_i32_0 = arith.constant 0 : i32
    return %arg0, %c0_i32 : i32, i32
  }
}

</mosaic_0001>

<llo_original>
// kernel: convlstm_cell_forward.1
$region0: #{convlstm_cell_forward.1}
  #allocation0 [shape = 'u32[]', space=smem, size = 0x4, offset = 0x4, fixed_abs, tag = 'smem constant byte address 0x4 - core index']
  #allocation1 [shape = 'u32[144,128]{1,0:T(1,128)}', space=vmem, size = 0x12000, scoped, tag = 'internal scratch']
  %s0 = inlined_call_operand.vmem [shape: bf16[512,384], index: 0, kind: input, shape index: {}]
  %s1 = inlined_call_operand.vmem [shape: f32[512,32], index: 1, kind: input, shape index: {}]
  %s2 = inlined_call_operand.vmem [shape: bf16[384,128], index: 2, kind: input, shape index: {}]
  %s3 = inlined_call_operand.vmem [shape: f32[1,128], index: 3, kind: input, shape index: {}]
  %s4 = inlined_call_operand.vmem [shape: f32[512,64], index: 4, kind: output, shape index: {}]
  %s5 = sld [smem:[#allocation0]]
  $region26: #{convlstm_cell_forward.1} parent=0
    _
  %s7 = ssub.s32 1, %s5
  %s8 = scalar_select 0, %s7, %s5
  // Predicated region
  $region2: #{convlstm_cell_forward.1} parent=0 // pred_check
    _
  $region3: #{convlstm_cell_forward.1} parent=0 // pred_check_branch
    %10 = sbr.rel (0) target = $region5
  $region4: #{convlstm_cell_forward.1} parent=0 // pred_region
    _
  $region5: #{convlstm_cell_forward.1} parent=0 // pred_fallthru
    _
  // Predicated region
  $region6: #{convlstm_cell_forward.1} parent=0 // pred_check
    _
  $region7: #{convlstm_cell_forward.1} parent=0 // pred_check_branch
    %12 = sbr.rel (0) target = $region9
  $region8: #{convlstm_cell_forward.1} parent=0 // pred_region
    _
  $region9: #{convlstm_cell_forward.1} parent=0 // pred_fallthru
    _
  // Predicated region
  $region10: #{convlstm_cell_forward.1} parent=0 // pred_check
    _
  $region11: #{convlstm_cell_forward.1} parent=0 // pred_check_branch
    %14 = sbr.rel (0) target = $region13
  $region12: #{convlstm_cell_forward.1} parent=0 // pred_region
    _
  $region13: #{convlstm_cell_forward.1} parent=0 // pred_fallthru
    _
  // Predicated region
  $region14: #{convlstm_cell_forward.1} parent=0 // pred_check
    _
  $region15: #{convlstm_cell_forward.1} parent=0 // pred_check_branch
    %16 = sbr.rel (0) target = $region17
  $region16: #{convlstm_cell_forward.1} parent=0 // pred_region
    _
  $region17: #{convlstm_cell_forward.1} parent=0 // pred_fallthru
    _
  %v18 = vld [vmem:[%s0] sm:$0xff]
  %v19 = vld [vmem:[%s0 + $0x8] sm:$0xf]
  %v20 = vld [vmem:[%s0 + $0xc] sm:$0xff]
  %v21 = vld [vmem:[%s0 + $0x14] sm:$0xf]
  %v22 = vld [vmem:[%s0 + $0x18] sm:$0xff]
  %v23 = vld [vmem:[%s0 + $0x20] sm:$0xf]
  %v24 = vld [vmem:[%s0 + $0x24] sm:$0xff]
  %v25 = vld [vmem:[%s0 + $0x2c] sm:$0xf]
  %v26 = vld [vmem:[%s0 + $0x30] sm:$0xff]
  %v27 = vld [vmem:[%s0 + $0x38] sm:$0xf]
  %v28 = vld [vmem:[%s0 + $0x3c] sm:$0xff]
  %v29 = vld [vmem:[%s0 + $0x44] sm:$0xf]
  %v30 = vld [vmem:[%s0 + $0x48] sm:$0xff]
  %v31 = vld [vmem:[%s0 + $0x50] sm:$0xf]
  %v32 = vld [vmem:[%s0 + $0x54] sm:$0xff]
  %v33 = vld [vmem:[%s0 + $0x5c] sm:$0xf]
  %v34 = vld [vmem:[%s0 + $0x60] sm:$0xff]
  %v35 = vld [vmem:[%s0 + $0x68] sm:$0xf]
  %v36 = vld [vmem:[%s0 + $0x6c] sm:$0xff]
  %v37 = vld [vmem:[%s0 + $0x74] sm:$0xf]
  %v38 = vld [vmem:[%s0 + $0x78] sm:$0xff]
  %v39 = vld [vmem:[%s0 + $0x80] sm:$0xf]
  %v40 = vld [vmem:[%s0 + $0x84] sm:$0xff]
  %v41 = vld [vmem:[%s0 + $0x8c] sm:$0xf]
  %v42 = vld [vmem:[%s0 + $0x90] sm:$0xff]
  %v43 = vld [vmem:[%s0 + $0x98] sm:$0xf]
  %v44 = vld [vmem:[%s0 + $0x9c] sm:$0xff]
  %v45 = vld [vmem:[%s0 + $0xa4] sm:$0xf]
  %v46 = vld [vmem:[%s0 + $0xa8] sm:$0xff]
  %v47 = vld [vmem:[%s0 + $0xb0] sm:$0xf]
  %v48 = vld [vmem:[%s0 + $0xb4] sm:$0xff]
  %v49 = vld [vmem:[%s0 + $0xbc] sm:$0xf]
  %v50 = vld [vmem:[%s0 + $0xc0] sm:$0xff]
  %v51 = vld [vmem:[%s0 + $0xc8] sm:$0xf]
  %v52 = vld [vmem:[%s0 + $0xcc] sm:$0xff]
  %v53 = vld [vmem:[%s0 + $0xd4] sm:$0xf]
  %v54 = vld [vmem:[%s0 + $0xd8] sm:$0xff]
  %v55 = vld [vmem:[%s0 + $0xe0] sm:$0xf]
  %v56 = vld [vmem:[%s0 + $0xe4] sm:$0xff]
  %v57 = vld [vmem:[%s0 + $0xec] sm:$0xf]
  %v58 = vld [vmem:[%s0 + $0xf0] sm:$0xff]
  %v59 = vld [vmem:[%s0 + $0xf8] sm:$0xf]
  %v60 = vld [vmem:[%s0 + $0xfc] sm:$0xff]
  %v61 = vld [vmem:[%s0 + $0x104] sm:$0xf]
  %v62 = vld [vmem:[%s0 + $0x108] sm:$0xff]
  %v63 = vld [vmem:[%s0 + $0x110] sm:$0xf]
  %v64 = vld [vmem:[%s0 + $0x114] sm:$0xff]
  %v65 = vld [vmem:[%s0 + $0x11c] sm:$0xf]
  %v66 = vld [vmem:[%s0 + $0x120] sm:$0xff]
  %v67 = vld [vmem:[%s0 + $0x128] sm:$0xf]
  %v68 = vld [vmem:[%s0 + $0x12c] sm:$0xff]
  %v69 = vld [vmem:[%s0 + $0x134] sm:$0xf]
  %v70 = vld [vmem:[%s0 + $0x138] sm:$0xff]
  %v71 = vld [vmem:[%s0 + $0x140] sm:$0xf]
  %v72 = vld [vmem:[%s0 + $0x144] sm:$0xff]
  %v73 = vld [vmem:[%s0 + $0x14c] sm:$0xf]
  %v74 = vld [vmem:[%s0 + $0x150] sm:$0xff]
  %v75 = vld [vmem:[%s0 + $0x158] sm:$0xf]
  %v76 = vld [vmem:[%s0 + $0x15c] sm:$0xff]
  %v77 = vld [vmem:[%s0 + $0x164] sm:$0xf]
  %v78 = vld [vmem:[%s0 + $0x168] sm:$0xff]
  %v79 = vld [vmem:[%s0 + $0x170] sm:$0xf]
  %v80 = vld [vmem:[%s0 + $0x174] sm:$0xff]
  %v81 = vld [vmem:[%s0 + $0x17c] sm:$0xf]
  %v82 = vld [vmem:[%s0 + $0x180] sm:$0xff]
  %v83 = vld [vmem:[%s0 + $0x188] sm:$0xf]
  %v84 = vld [vmem:[%s0 + $0x18c] sm:$0xff]
  %v85 = vld [vmem:[%s0 + $0x194] sm:$0xf]
  %v86 = vld [vmem:[%s0 + $0x198] sm:$0xff]
  %v87 = vld [vmem:[%s0 + $0x1a0] sm:$0xf]
  %v88 = vld [vmem:[%s0 + $0x1a4] sm:$0xff]
  %v89 = vld [vmem:[%s0 + $0x1ac] sm:$0xf]
  %v90 = vld [vmem:[%s0 + $0x1b0] sm:$0xff]
  %v91 = vld [vmem:[%s0 + $0x1b8] sm:$0xf]
  %v92 = vld [vmem:[%s0 + $0x1bc] sm:$0xff]
  %v93 = vld [vmem:[%s0 + $0x1c4] sm:$0xf]
  %v94 = vld [vmem:[%s0 + $0x1c8] sm:$0xff]
  %v95 = vld [vmem:[%s0 + $0x1d0] sm:$0xf]
  %v96 = vld [vmem:[%s0 + $0x1d4] sm:$0xff]
  %v97 = vld [vmem:[%s0 + $0x1dc] sm:$0xf]
  %v98 = vld [vmem:[%s0 + $0x1e0] sm:$0xff]
  %v99 = vld [vmem:[%s0 + $0x1e8] sm:$0xf]
  %v100 = vld [vmem:[%s0 + $0x1ec] sm:$0xff]
  %v101 = vld [vmem:[%s0 + $0x1f4] sm:$0xf]
  %v102 = vld [vmem:[%s0 + $0x1f8] sm:$0xff]
  %v103 = vld [vmem:[%s0 + $0x200] sm:$0xf]
  %v104 = vld [vmem:[%s0 + $0x204] sm:$0xff]
  %v105 = vld [vmem:[%s0 + $0x20c] sm:$0xf]
  %v106 = vld [vmem:[%s0 + $0x210] sm:$0xff]
  %v107 = vld [vmem:[%s0 + $0x218] sm:$0xf]
  %v108 = vld [vmem:[%s0 + $0x21c] sm:$0xff]
  %v109 = vld [vmem:[%s0 + $0x224] sm:$0xf]
  %v110 = vld [vmem:[%s0 + $0x228] sm:$0xff]
  %v111 = vld [vmem:[%s0 + $0x230] sm:$0xf]
  %v112 = vld [vmem:[%s0 + $0x234] sm:$0xff]
  %v113 = vld [vmem:[%s0 + $0x23c] sm:$0xf]
  %v114 = vld [vmem:[%s0 + $0x240] sm:$0xff]
  %v115 = vld [vmem:[%s0 + $0x248] sm:$0xf]
  %v116 = vld [vmem:[%s0 + $0x24c] sm:$0xff]
  %v117 = vld [vmem:[%s0 + $0x254] sm:$0xf]
  %v118 = vld [vmem:[%s0 + $0x258] sm:$0xff]
  %v119 = vld [vmem:[%s0 + $0x260] sm:$0xf]
  %v120 = vld [vmem:[%s0 + $0x264] sm:$0xff]
  %v121 = vld [vmem:[%s0 + $0x26c] sm:$0xf]
  %v122 = vld [vmem:[%s0 + $0x270] sm:$0xff]
  %v123 = vld [vmem:[%s0 + $0x278] sm:$0xf]
  %v124 = vld [vmem:[%s0 + $0x27c] sm:$0xff]
  %v125 = vld [vmem:[%s0 + $0x284] sm:$0xf]
  %v126 = vld [vmem:[%s0 + $0x288] sm:$0xff]
  %v127 = vld [vmem:[%s0 + $0x290] sm:$0xf]
  %v128 = vld [vmem:[%s0 + $0x294] sm:$0xff]
  %v129 = vld [vmem:[%s0 + $0x29c] sm:$0xf]
  %v130 = vld [vmem:[%s0 + $0x2a0] sm:$0xff]
  %v131 = vld [vmem:[%s0 + $0x2a8] sm:$0xf]
  %v132 = vld [vmem:[%s0 + $0x2ac] sm:$0xff]
  %v133 = vld [vmem:[%s0 + $0x2b4] sm:$0xf]
  %v134 = vld [vmem:[%s0 + $0x2b8] sm:$0xff]
  %v135 = vld [vmem:[%s0 + $0x2c0] sm:$0xf]
  %v136 = vld [vmem:[%s0 + $0x2c4] sm:$0xff]
  %v137 = vld [vmem:[%s0 + $0x2cc] sm:$0xf]
  %v138 = vld [vmem:[%s0 + $0x2d0] sm:$0xff]
  %v139 = vld [vmem:[%s0 + $0x2d8] sm:$0xf]
  %v140 = vld [vmem:[%s0 + $0x2dc] sm:$0xff]
  %v141 = vld [vmem:[%s0 + $0x2e4] sm:$0xf]
  %v142 = vld [vmem:[%s0 + $0x2e8] sm:$0xff]
  %v143 = vld [vmem:[%s0 + $0x2f0] sm:$0xf]
  %v144 = vld [vmem:[%s0 + $0x2f4] sm:$0xff]
  %v145 = vld [vmem:[%s0 + $0x2fc] sm:$0xf]
  %v146 = vld [vmem:[%s2] sm:$0xf]
  %v147 = vld [vmem:[%s2 + $0x4] sm:$0xf]
  %v148 = vld [vmem:[%s2 + $0x8] sm:$0xf]
  %v149 = vld [vmem:[%s2 + $0xc] sm:$0xf]
  %v150 = vld [vmem:[%s2 + $0x10] sm:$0xf]
  %v151 = vld [vmem:[%s2 + $0x14] sm:$0xf]
  %v152 = vld [vmem:[%s2 + $0x18] sm:$0xf]
  %v153 = vld [vmem:[%s2 + $0x1c] sm:$0xf]
  %v154 = vld [vmem:[%s2 + $0x20] sm:$0xf]
  %v155 = vld [vmem:[%s2 + $0x24] sm:$0xf]
  %v156 = vld [vmem:[%s2 + $0x28] sm:$0xf]
  %v157 = vld [vmem:[%s2 + $0x2c] sm:$0xf]
  %v158 = vld [vmem:[%s2 + $0x30] sm:$0xf]
  %v159 = vld [vmem:[%s2 + $0x34] sm:$0xf]
  %v160 = vld [vmem:[%s2 + $0x38] sm:$0xf]
  %v161 = vld [vmem:[%s2 + $0x3c] sm:$0xf]
  %v162 = vld [vmem:[%s2 + $0x40] sm:$0xf]
  %v163 = vld [vmem:[%s2 + $0x44] sm:$0xf]
  %v164 = vld [vmem:[%s2 + $0x48] sm:$0xf]
  %v165 = vld [vmem:[%s2 + $0x4c] sm:$0xf]
  %v166 = vld [vmem:[%s2 + $0x50] sm:$0xf]
  %v167 = vld [vmem:[%s2 + $0x54] sm:$0xf]
  %v168 = vld [vmem:[%s2 + $0x58] sm:$0xf]
  %v169 = vld [vmem:[%s2 + $0x5c] sm:$0xf]
  %v170 = vld [vmem:[%s2 + $0x60] sm:$0xf]
  %v171 = vld [vmem:[%s2 + $0x64] sm:$0xf]
  %v172 = vld [vmem:[%s2 + $0x68] sm:$0xf]
  %v173 = vld [vmem:[%s2 + $0x6c] sm:$0xf]
  %v174 = vld [vmem:[%s2 + $0x70] sm:$0xf]
  %v175 = vld [vmem:[%s2 + $0x74] sm:$0xf]
  %v176 = vld [vmem:[%s2 + $0x78] sm:$0xf]
  %v177 = vld [vmem:[%s2 + $0x7c] sm:$0xf]
  %v178 = vld [vmem:[%s2 + $0x80] sm:$0xf]
  %v179 = vld [vmem:[%s2 + $0x84] sm:$0xf]
  %v180 = vld [vmem:[%s2 + $0x88] sm:$0xf]
  %v181 = vld [vmem:[%s2 + $0x8c] sm:$0xf]
  %v182 = vld [vmem:[%s2 + $0x90] sm:$0xf]
  %v183 = vld [vmem:[%s2 + $0x94] sm:$0xf]
  %v184 = vld [vmem:[%s2 + $0x98] sm:$0xf]
  %v185 = vld [vmem:[%s2 + $0x9c] sm:$0xf]
  %v186 = vld [vmem:[%s2 + $0xa0] sm:$0xf]
  %v187 = vld [vmem:[%s2 + $0xa4] sm:$0xf]
  %v188 = vld [vmem:[%s2 + $0xa8] sm:$0xf]
  %v189 = vld [vmem:[%s2 + $0xac] sm:$0xf]
  %v190 = vld [vmem:[%s2 + $0xb0] sm:$0xf]
  %v191 = vld [vmem:[%s2 + $0xb4] sm:$0xf]
  %v192 = vld [vmem:[%s2 + $0xb8] sm:$0xf]
  %v193 = vld [vmem:[%s2 + $0xbc] sm:$0xf]
  %v194 = vld [vmem:[%s3] sm:$0x1]
  %v196 = vlaneseq
  %v197 = vshrl.u32 %v196, 7
  %v198 = vsub.s32 0, %v197
  %v199 = vrot.slane %v194, %v198
  %v329 = vunpack.c.l.b16 %v18
  %v330 = vunpack.c.h.b16 %v18
  %v331 = vunpack.c.l.b16 %v19
  %v332 = vunpack.c.l.b16 %v20
  %v333 = vunpack.c.h.b16 %v20
  %v334 = vunpack.c.l.b16 %v21
  %v335 = vunpack.c.l.b16 %v22
  %v336 = vunpack.c.h.b16 %v22
  %v337 = vunpack.c.l.b16 %v23
  %v338 = vunpack.c.l.b16 %v24
  %v339 = vunpack.c.h.b16 %v24
  %v340 = vunpack.c.l.b16 %v25
  %v341 = vunpack.c.l.b16 %v26
  %v342 = vunpack.c.h.b16 %v26
  %v343 = vunpack.c.l.b16 %v27
  %v344 = vunpack.c.l.b16 %v28
  %v345 = vunpack.c.h.b16 %v28
  %v346 = vunpack.c.l.b16 %v29
  %v347 = vunpack.c.l.b16 %v30
  %v348 = vunpack.c.h.b16 %v30
  %v349 = vunpack.c.l.b16 %v31
  %v350 = vunpack.c.l.b16 %v32
  %v351 = vunpack.c.h.b16 %v32
  %v352 = vunpack.c.l.b16 %v33
  %v353 = vunpack.c.l.b16 %v34
  %v354 = vunpack.c.h.b16 %v34
  %v355 = vunpack.c.l.b16 %v35
  %v356 = vunpack.c.l.b16 %v36
  %v357 = vunpack.c.h.b16 %v36
  %v358 = vunpack.c.l.b16 %v37
  %v359 = vunpack.c.l.b16 %v38
  %v360 = vunpack.c.h.b16 %v38
  %v361 = vunpack.c.l.b16 %v39
  %v362 = vunpack.c.l.b16 %v40
  %v363 = vunpack.c.h.b16 %v40
  %v364 = vunpack.c.l.b16 %v41
  %v365 = vunpack.c.l.b16 %v42
  %v366 = vunpack.c.h.b16 %v42
  %v367 = vunpack.c.l.b16 %v43
  %v368 = vunpack.c.l.b16 %v44
  %v369 = vunpack.c.h.b16 %v44
  %v370 = vunpack.c.l.b16 %v45
  %v371 = vunpack.c.l.b16 %v46
  %v372 = vunpack.c.h.b16 %v46
  %v373 = vunpack.c.l.b16 %v47
  %v374 = vunpack.c.l.b16 %v48
  %v375 = vunpack.c.h.b16 %v48
  %v376 = vunpack.c.l.b16 %v49
  %v377 = vunpack.c.l.b16 %v50
  %v378 = vunpack.c.h.b16 %v50
  %v379 = vunpack.c.l.b16 %v51
  %v380 = vunpack.c.l.b16 %v52
  %v381 = vunpack.c.h.b16 %v52
  %v382 = vunpack.c.l.b16 %v53
  %v383 = vunpack.c.l.b16 %v54
  %v384 = vunpack.c.h.b16 %v54
  %v385 = vunpack.c.l.b16 %v55
  %v386 = vunpack.c.l.b16 %v56
  %v387 = vunpack.c.h.b16 %v56
  %v388 = vunpack.c.l.b16 %v57
  %v389 = vunpack.c.l.b16 %v58
  %v390 = vunpack.c.h.b16 %v58
  %v391 = vunpack.c.l.b16 %v59
  %v392 = vunpack.c.l.b16 %v60
  %v393 = vunpack.c.h.b16 %v60
  %v394 = vunpack.c.l.b16 %v61
  %v395 = vunpack.c.l.b16 %v62
  %v396 = vunpack.c.h.b16 %v62
  %v397 = vunpack.c.l.b16 %v63
  %v398 = vunpack.c.l.b16 %v64
  %v399 = vunpack.c.h.b16 %v64
  %v400 = vunpack.c.l.b16 %v65
  %v401 = vunpack.c.l.b16 %v66
  %v402 = vunpack.c.h.b16 %v66
  %v403 = vunpack.c.l.b16 %v67
  %v404 = vunpack.c.l.b16 %v68
  %v405 = vunpack.c.h.b16 %v68
  %v406 = vunpack.c.l.b16 %v69
  %v407 = vunpack.c.l.b16 %v70
  %v408 = vunpack.c.h.b16 %v70
  %v409 = vunpack.c.l.b16 %v71
  %v410 = vunpack.c.l.b16 %v72
  %v411 = vunpack.c.h.b16 %v72
  %v412 = vunpack.c.l.b16 %v73
  %v413 = vunpack.c.l.b16 %v74
  %v414 = vunpack.c.h.b16 %v74
  %v415 = vunpack.c.l.b16 %v75
  %v416 = vunpack.c.l.b16 %v76
  %v417 = vunpack.c.h.b16 %v76
  %v418 = vunpack.c.l.b16 %v77
  %v419 = vunpack.c.l.b16 %v78
  %v420 = vunpack.c.h.b16 %v78
  %v421 = vunpack.c.l.b16 %v79
  %v422 = vunpack.c.l.b16 %v80
  %v423 = vunpack.c.h.b16 %v80
  %v424 = vunpack.c.l.b16 %v81
  %v425 = vunpack.c.l.b16 %v82
  %v426 = vunpack.c.h.b16 %v82
  %v427 = vunpack.c.l.b16 %v83
  %v428 = vunpack.c.l.b16 %v84
  %v429 = vunpack.c.h.b16 %v84
  %v430 = vunpack.c.l.b16 %v85
  %v431 = vunpack.c.l.b16 %v86
  %v432 = vunpack.c.h.b16 %v86
  %v433 = vunpack.c.l.b16 %v87
  %v434 = vunpack.c.l.b16 %v88
  %v435 = vunpack.c.h.b16 %v88
  %v436 = vunpack.c.l.b16 %v89
  %v437 = vunpack.c.l.b16 %v90
  %v438 = vunpack.c.h.b16 %v90
  %v439 = vunpack.c.l.b16 %v91
  %v440 = vunpack.c.l.b16 %v92
  %v441 = vunpack.c.h.b16 %v92
  %v442 = vunpack.c.l.b16 %v93
  %v443 = vunpack.c.l.b16 %v94
  %v444 = vunpack.c.h.b16 %v94
  %v445 = vunpack.c.l.b16 %v95
  %v446 = vunpack.c.l.b16 %v96
  %v447 = vunpack.c.h.b16 %v96
  %v448 = vunpack.c.l.b16 %v97
  %v449 = vunpack.c.l.b16 %v98
  %v450 = vunpack.c.h.b16 %v98
  %v451 = vunpack.c.l.b16 %v99
  %v452 = vunpack.c.l.b16 %v100
  %v453 = vunpack.c.h.b16 %v100
  %v454 = vunpack.c.l.b16 %v101
  %v455 = vunpack.c.l.b16 %v102
  %v456 = vunpack.c.h.b16 %v102
  %v457 = vunpack.c.l.b16 %v103
  %v458 = vunpack.c.l.b16 %v104
  %v459 = vunpack.c.h.b16 %v104
  %v460 = vunpack.c.l.b16 %v105
  %v461 = vunpack.c.l.b16 %v106
  %v462 = vunpack.c.h.b16 %v106
  %v463 = vunpack.c.l.b16 %v107
  %v464 = vunpack.c.l.b16 %v108
  %v465 = vunpack.c.h.b16 %v108
  %v466 = vunpack.c.l.b16 %v109
  %v467 = vunpack.c.l.b16 %v110
  %v468 = vunpack.c.h.b16 %v110
  %v469 = vunpack.c.l.b16 %v111
  %v470 = vunpack.c.l.b16 %v112
  %v471 = vunpack.c.h.b16 %v112
  %v472 = vunpack.c.l.b16 %v113
  %v473 = vunpack.c.l.b16 %v114
  %v474 = vunpack.c.h.b16 %v114
  %v475 = vunpack.c.l.b16 %v115
  %v476 = vunpack.c.l.b16 %v116
  %v477 = vunpack.c.h.b16 %v116
  %v478 = vunpack.c.l.b16 %v117
  %v479 = vunpack.c.l.b16 %v118
  %v480 = vunpack.c.h.b16 %v118
  %v481 = vunpack.c.l.b16 %v119
  %v482 = vunpack.c.l.b16 %v120
  %v483 = vunpack.c.h.b16 %v120
  %v484 = vunpack.c.l.b16 %v121
  %v485 = vunpack.c.l.b16 %v122
  %v486 = vunpack.c.h.b16 %v122
  %v487 = vunpack.c.l.b16 %v123
  %v488 = vunpack.c.l.b16 %v124
  %v489 = vunpack.c.h.b16 %v124
  %v490 = vunpack.c.l.b16 %v125
  %v491 = vunpack.c.l.b16 %v126
  %v492 = vunpack.c.h.b16 %v126
  %v493 = vunpack.c.l.b16 %v127
  %v494 = vunpack.c.l.b16 %v128
  %v495 = vunpack.c.h.b16 %v128
  %v496 = vunpack.c.l.b16 %v129
  %v497 = vunpack.c.l.b16 %v130
  %v498 = vunpack.c.h.b16 %v130
  %v499 = vunpack.c.l.b16 %v131
  %v500 = vunpack.c.l.b16 %v132
  %v501 = vunpack.c.h.b16 %v132
  %v502 = vunpack.c.l.b16 %v133
  %v503 = vunpack.c.l.b16 %v134
  %v504 = vunpack.c.h.b16 %v134
  %v505 = vunpack.c.l.b16 %v135
  %v506 = vunpack.c.l.b16 %v136
  %v507 = vunpack.c.h.b16 %v136
  %v508 = vunpack.c.l.b16 %v137
  %v509 = vunpack.c.l.b16 %v138
  %v510 = vunpack.c.h.b16 %v138
  %v511 = vunpack.c.l.b16 %v139
  %v512 = vunpack.c.l.b16 %v140
  %v513 = vunpack.c.h.b16 %v140
  %v514 = vunpack.c.l.b16 %v141
  %v515 = vunpack.c.l.b16 %v142
  %v516 = vunpack.c.h.b16 %v142
  %v517 = vunpack.c.l.b16 %v143
  %v518 = vunpack.c.l.b16 %v144
  %v519 = vunpack.c.h.b16 %v144
  %v520 = vunpack.c.l.b16 %v145
  %v521 = vpack.c.b16 %v332, %v329
  %v522 = vpack.c.b16 %v333, %v330
  %v523 = vpack.c.b16 %v334, %v331
  %v524 = vpack.c.b16 %v338, %v335
  %v525 = vpack.c.b16 %v339, %v336
  %v526 = vpack.c.b16 %v340, %v337
  %v527 = vpack.c.b16 %v344, %v341
  %v528 = vpack.c.b16 %v345, %v342
  %v529 = vpack.c.b16 %v346, %v343
  %v530 = vpack.c.b16 %v350, %v347
  %v531 = vpack.c.b16 %v351, %v348
  %v532 = vpack.c.b16 %v352, %v349
  %v533 = vpack.c.b16 %v356, %v353
  %v534 = vpack.c.b16 %v357, %v354
  %v535 = vpack.c.b16 %v358, %v355
  %v536 = vpack.c.b16 %v362, %v359
  %v537 = vpack.c.b16 %v363, %v360
  %v538 = vpack.c.b16 %v364, %v361
  %v539 = vpack.c.b16 %v368, %v365
  %v540 = vpack.c.b16 %v369, %v366
  %v541 = vpack.c.b16 %v370, %v367
  %v542 = vpack.c.b16 %v374, %v371
  %v543 = vpack.c.b16 %v375, %v372
  %v544 = vpack.c.b16 %v376, %v373
  %v545 = vpack.c.b16 %v380, %v377
  %v546 = vpack.c.b16 %v381, %v378
  %v547 = vpack.c.b16 %v382, %v379
  %v548 = vpack.c.b16 %v386, %v383
  %v549 = vpack.c.b16 %v387, %v384
  %v550 = vpack.c.b16 %v388, %v385
  %v551 = vpack.c.b16 %v392, %v389
  %v552 = vpack.c.b16 %v393, %v390
  %v553 = vpack.c.b16 %v394, %v391
  %v554 = vpack.c.b16 %v398, %v395
  %v555 = vpack.c.b16 %v399, %v396
  %v556 = vpack.c.b16 %v400, %v397
  %v557 = vpack.c.b16 %v404, %v401
  %v558 = vpack.c.b16 %v405, %v402
  %v559 = vpack.c.b16 %v406, %v403
  %v560 = vpack.c.b16 %v410, %v407
  %v561 = vpack.c.b16 %v411, %v408
  %v562 = vpack.c.b16 %v412, %v409
  %v563 = vpack.c.b16 %v416, %v413
  %v564 = vpack.c.b16 %v417, %v414
  %v565 = vpack.c.b16 %v418, %v415
  %v566 = vpack.c.b16 %v422, %v419
  %v567 = vpack.c.b16 %v423, %v420
  %v568 = vpack.c.b16 %v424, %v421
  %v569 = vpack.c.b16 %v428, %v425
  %v570 = vpack.c.b16 %v429, %v426
  %v571 = vpack.c.b16 %v430, %v427
  %v572 = vpack.c.b16 %v434, %v431
  %v573 = vpack.c.b16 %v435, %v432
  %v574 = vpack.c.b16 %v436, %v433
  %v575 = vpack.c.b16 %v440, %v437
  %v576 = vpack.c.b16 %v441, %v438
  %v577 = vpack.c.b16 %v442, %v439
  %v578 = vpack.c.b16 %v446, %v443
  %v579 = vpack.c.b16 %v447, %v444
  %v580 = vpack.c.b16 %v448, %v445
  %v581 = vpack.c.b16 %v452, %v449
  %v582 = vpack.c.b16 %v453, %v450
  %v583 = vpack.c.b16 %v454, %v451
  %v584 = vpack.c.b16 %v458, %v455
  %v585 = vpack.c.b16 %v459, %v456
  %v586 = vpack.c.b16 %v460, %v457
  %v587 = vpack.c.b16 %v464, %v461
  %v588 = vpack.c.b16 %v465, %v462
  %v589 = vpack.c.b16 %v466, %v463
  %v590 = vpack.c.b16 %v470, %v467
  %v591 = vpack.c.b16 %v471, %v468
  %v592 = vpack.c.b16 %v472, %v469
  %v593 = vpack.c.b16 %v476, %v473
  %v594 = vpack.c.b16 %v477, %v474
  %v595 = vpack.c.b16 %v478, %v475
  %v596 = vpack.c.b16 %v482, %v479
  %v597 = vpack.c.b16 %v483, %v480
  %v598 = vpack.c.b16 %v484, %v481
  %v599 = vpack.c.b16 %v488, %v485
  %v600 = vpack.c.b16 %v489, %v486
  %v601 = vpack.c.b16 %v490, %v487
  %v602 = vpack.c.b16 %v494, %v491
  %v603 = vpack.c.b16 %v495, %v492
  %v604 = vpack.c.b16 %v496, %v493
  %v605 = vpack.c.b16 %v500, %v497
  %v606 = vpack.c.b16 %v501, %v498
  %v607 = vpack.c.b16 %v502, %v499
  %v608 = vpack.c.b16 %v506, %v503
  %v609 = vpack.c.b16 %v507, %v504
  %v610 = vpack.c.b16 %v508, %v505
  %v611 = vpack.c.b16 %v512, %v509
  %v612 = vpack.c.b16 %v513, %v510
  %v613 = vpack.c.b16 %v514, %v511
  %v614 = vpack.c.b16 %v518, %v515
  %v615 = vpack.c.b16 %v519, %v516
  %v616 = vpack.c.b16 %v520, %v517
  %v761 = vunpack.c.l.b16 %v146
  %v762 = vunpack.c.l.b16 %v147
  %v763 = vunpack.c.l.b16 %v148
  %v764 = vunpack.c.l.b16 %v149
  %v765 = vunpack.c.l.b16 %v150
  %v766 = vunpack.c.l.b16 %v151
  %v767 = vunpack.c.l.b16 %v152
  %v768 = vunpack.c.l.b16 %v153
  %v769 = vunpack.c.l.b16 %v154
  %v770 = vunpack.c.l.b16 %v155
  %v771 = vunpack.c.l.b16 %v156
  %v772 = vunpack.c.l.b16 %v157
  %v773 = vunpack.c.l.b16 %v158
  %v774 = vunpack.c.l.b16 %v159
  %v775 = vunpack.c.l.b16 %v160
  %v776 = vunpack.c.l.b16 %v161
  %v777 = vunpack.c.l.b16 %v162
  %v778 = vunpack.c.l.b16 %v163
  %v779 = vunpack.c.l.b16 %v164
  %v780 = vunpack.c.l.b16 %v165
  %v781 = vunpack.c.l.b16 %v166
  %v782 = vunpack.c.l.b16 %v167
  %v783 = vunpack.c.l.b16 %v168
  %v784 = vunpack.c.l.b16 %v169
  %v785 = vunpack.c.l.b16 %v170
  %v786 = vunpack.c.l.b16 %v171
  %v787 = vunpack.c.l.b16 %v172
  %v788 = vunpack.c.l.b16 %v173
  %v789 = vunpack.c.l.b16 %v174
  %v790 = vunpack.c.l.b16 %v175
  %v791 = vunpack.c.l.b16 %v176
  %v792 = vunpack.c.l.b16 %v177
  %v793 = vunpack.c.l.b16 %v178
  %v794 = vunpack.c.l.b16 %v179
  %v795 = vunpack.c.l.b16 %v180
  %v796 = vunpack.c.l.b16 %v181
  %v797 = vunpack.c.l.b16 %v182
  %v798 = vunpack.c.l.b16 %v183
  %v799 = vunpack.c.l.b16 %v184
  %v800 = vunpack.c.l.b16 %v185
  %v801 = vunpack.c.l.b16 %v186
  %v802 = vunpack.c.l.b16 %v187
  %v803 = vunpack.c.l.b16 %v188
  %v804 = vunpack.c.l.b16 %v189
  %v805 = vunpack.c.l.b16 %v190
  %v806 = vunpack.c.l.b16 %v191
  %v807 = vunpack.c.l.b16 %v192
  %v808 = vunpack.c.l.b16 %v193
  %v809 = vpack.c.b16 %v762, %v761
  %v810 = vpack.c.b16 %v764, %v763
  %v811 = vpack.c.b16 %v766, %v765
  %v812 = vpack.c.b16 %v768, %v767
  %v813 = vpack.c.b16 %v770, %v769
  %v814 = vpack.c.b16 %v772, %v771
  %v815 = vpack.c.b16 %v774, %v773
  %v816 = vpack.c.b16 %v776, %v775
  %v817 = vpack.c.b16 %v778, %v777
  %v818 = vpack.c.b16 %v780, %v779
  %v819 = vpack.c.b16 %v782, %v781
  %v820 = vpack.c.b16 %v784, %v783
  %v821 = vpack.c.b16 %v786, %v785
  %v822 = vpack.c.b16 %v788, %v787
  %v823 = vpack.c.b16 %v790, %v789
  %v824 = vpack.c.b16 %v792, %v791
  %v825 = vpack.c.b16 %v794, %v793
  %v826 = vpack.c.b16 %v796, %v795
  %v827 = vpack.c.b16 %v798, %v797
  %v828 = vpack.c.b16 %v800, %v799
  %v829 = vpack.c.b16 %v802, %v801
  %v830 = vpack.c.b16 %v804, %v803
  %v831 = vpack.c.b16 %v806, %v805
  %v832 = vpack.c.b16 %v808, %v807
  %857 = vmatprep.subr.bf16.mxu0 0
  %858 = vmatpush1.bf16.msra.mxu0 %v816
  %859 = vmatprep.subr.bf16.mxu0 0
  %860 = vmatpush1.bf16.msra.mxu0 %v815
  %861 = vmatprep.subr.bf16.mxu0 0
  %862 = vmatpush1.bf16.msra.mxu0 %v814
  %863 = vmatprep.subr.bf16.mxu0 0
  %864 = vmatpush1.bf16.msra.mxu0 %v813
  %865 = vmatprep.subr.bf16.mxu0 0
  %866 = vmatpush1.bf16.msra.mxu0 %v812
  %867 = vmatprep.subr.bf16.mxu0 0
  %868 = vmatpush1.bf16.msra.mxu0 %v811
  %869 = vmatprep.subr.bf16.mxu0 0
  %870 = vmatpush1.bf16.msra.mxu0 %v810
  %871 = vmatprep.subr.bf16.mxu0 0
  %872 = vmatpush1.bf16.msra.mxu0 %v809
  %873 = vmatprep.subr.bf16.mxu0 0
  %874 = vmatpush2.bf16.msra.mxu0 %v824
  %875 = vmatprep.subr.bf16.mxu0 0
  %876 = vmatpush2.bf16.msra.mxu0 %v823
  %877 = vmatprep.subr.bf16.mxu0 0
  %878 = vmatpush2.bf16.msra.mxu0 %v822
  %879 = vmatprep.subr.bf16.mxu0 0
  %880 = vmatpush2.bf16.msra.mxu0 %v821
  %881 = vmatprep.subr.bf16.mxu0 0
  %882 = vmatpush2.bf16.msra.mxu0 %v820
  %883 = vmatprep.subr.bf16.mxu0 0
  %884 = vmatpush2.bf16.msra.mxu0 %v819
  %885 = vmatprep.subr.bf16.mxu0 0
  %886 = vmatpush2.bf16.msra.mxu0 %v818
  %887 = vmatprep.subr.bf16.mxu0 0
  %888 = vmatpush2.bf16.msra.mxu0 %v817
  %889 = vmatprep.mubr.bf16.mxu0 %v522
  %890 = vmatmul.mubr.bf16.gmra.mxu0 %v521
  %v891 = vpop.f32.mrf.mxu0
  %v892 = vadd.f32 %v199, %v891
  %v893 = vpop.f32.mrf.mxu0
  %v894 = vpop.f32.mrf.mxu0
  %v895 = vadd.f32 %v199, %v894
  %v896 = vpop.f32.mrf.mxu0
  %897 = vmatprep.mubr.bf16.mxu0 %v525
  %898 = vmatmul.mubr.bf16.gmra.mxu0 %v524
  %v899 = vpop.f32.mrf.mxu0
  %v900 = vadd.f32 %v199, %v899
  %v901 = vpop.f32.mrf.mxu0
  %v902 = vpop.f32.mrf.mxu0
  %v903 = vadd.f32 %v199, %v902
  %v904 = vpop.f32.mrf.mxu0
  %905 = vmatprep.mubr.bf16.mxu0 %v528
  %906 = vmatmul.mubr.bf16.gmra.mxu0 %v527
  %v907 = vpop.f32.mrf.mxu0
  %v908 = vadd.f32 %v199, %v907
  %v909 = vpop.f32.mrf.mxu0
  %v910 = vpop.f32.mrf.mxu0
  %v911 = vadd.f32 %v199, %v910
  %v912 = vpop.f32.mrf.mxu0
  %913 = vmatprep.mubr.bf16.mxu0 %v531
  %914 = vmatmul.mubr.bf16.gmra.mxu0 %v530
  %v915 = vpop.f32.mrf.mxu0
  %v916 = vadd.f32 %v199, %v915
  %v917 = vpop.f32.mrf.mxu0
  %v918 = vpop.f32.mrf.mxu0
  %v919 = vadd.f32 %v199, %v918
  %v920 = vpop.f32.mrf.mxu0
  %921 = vmatprep.mubr.bf16.mxu0 %v534
  %922 = vmatmul.mubr.bf16.gmra.mxu0 %v533
  %v923 = vpop.f32.mrf.mxu0
  %v924 = vadd.f32 %v199, %v923
  %v925 = vpop.f32.mrf.mxu0
  %v926 = vpop.f32.mrf.mxu0
  %v927 = vadd.f32 %v199, %v926
  %v928 = vpop.f32.mrf.mxu0
  %929 = vmatprep.mubr.bf16.mxu0 %v537
  %930 = vmatmul.mubr.bf16.gmra.mxu0 %v536
  %v931 = vpop.f32.mrf.mxu0
  %v932 = vadd.f32 %v199, %v931
  %v933 = vpop.f32.mrf.mxu0
  %v934 = vpop.f32.mrf.mxu0
  %v935 = vadd.f32 %v199, %v934
  %v936 = vpop.f32.mrf.mxu0
  %937 = vmatprep.mubr.bf16.mxu0 %v540
  %938 = vmatmul.mubr.bf16.gmra.mxu0 %v539
  %v939 = vpop.f32.mrf.mxu0
  %v940 = vadd.f32 %v199, %v939
  %v941 = vpop.f32.mrf.mxu0
  %v942 = vpop.f32.mrf.mxu0
  %v943 = vadd.f32 %v199, %v942
  %v944 = vpop.f32.mrf.mxu0
  %945 = vmatprep.mubr.bf16.mxu0 %v543
  %946 = vmatmul.mubr.bf16.gmra.mxu0 %v542
  %v947 = vpop.f32.mrf.mxu0
  %v948 = vadd.f32 %v199, %v947
  %v949 = vpop.f32.mrf.mxu0
  %v950 = vpop.f32.mrf.mxu0
  %v951 = vadd.f32 %v199, %v950
  %v952 = vpop.f32.mrf.mxu0
  %953 = vmatprep.mubr.bf16.mxu0 %v546
  %954 = vmatmul.mubr.bf16.gmra.mxu0 %v545
  %v955 = vpop.f32.mrf.mxu0
  %v956 = vadd.f32 %v199, %v955
  %v957 = vpop.f32.mrf.mxu0
  %v958 = vpop.f32.mrf.mxu0
  %v959 = vadd.f32 %v199, %v958
  %v960 = vpop.f32.mrf.mxu0
  %961 = vmatprep.mubr.bf16.mxu0 %v549
  %962 = vmatmul.mubr.bf16.gmra.mxu0 %v548
  %v963 = vpop.f32.mrf.mxu0
  %v964 = vadd.f32 %v199, %v963
  %v965 = vpop.f32.mrf.mxu0
  %v966 = vpop.f32.mrf.mxu0
  %v967 = vadd.f32 %v199, %v966
  %v968 = vpop.f32.mrf.mxu0
  %969 = vmatprep.mubr.bf16.mxu0 %v552
  %970 = vmatmul.mubr.bf16.gmra.mxu0 %v551
  %v971 = vpop.f32.mrf.mxu0
  %v972 = vadd.f32 %v199, %v971
  %v973 = vpop.f32.mrf.mxu0
  %v974 = vpop.f32.mrf.mxu0
  %v975 = vadd.f32 %v199, %v974
  %v976 = vpop.f32.mrf.mxu0
  %977 = vmatprep.mubr.bf16.mxu0 %v555
  %978 = vmatmul.mubr.bf16.gmra.mxu0 %v554
  %v979 = vpop.f32.mrf.mxu0
  %v980 = vadd.f32 %v199, %v979
  %v981 = vpop.f32.mrf.mxu0
  %v982 = vpop.f32.mrf.mxu0
  %v983 = vadd.f32 %v199, %v982
  %v984 = vpop.f32.mrf.mxu0
  %985 = vmatprep.mubr.bf16.mxu0 %v558
  %986 = vmatmul.mubr.bf16.gmra.mxu0 %v557
  %v987 = vpop.f32.mrf.mxu0
  %v988 = vadd.f32 %v199, %v987
  %v989 = vpop.f32.mrf.mxu0
  %v990 = vpop.f32.mrf.mxu0
  %v991 = vadd.f32 %v199, %v990
  %v992 = vpop.f32.mrf.mxu0
  %993 = vmatprep.mubr.bf16.mxu0 %v561
  %994 = vmatmul.mubr.bf16.gmra.mxu0 %v560
  %v995 = vpop.f32.mrf.mxu0
  %v996 = vadd.f32 %v199, %v995
  %v997 = vpop.f32.mrf.mxu0
  %v998 = vpop.f32.mrf.mxu0
  %v999 = vadd.f32 %v199, %v998
  %v1000 = vpop.f32.mrf.mxu0
  %1001 = vmatprep.mubr.bf16.mxu0 %v564
  %1002 = vmatmul.mubr.bf16.gmra.mxu0 %v563
  %v1003 = vpop.f32.mrf.mxu0
  %v1004 = vadd.f32 %v199, %v1003
  %v1005 = vpop.f32.mrf.mxu0
  %v1006 = vpop.f32.mrf.mxu0
  %v1007 = vadd.f32 %v199, %v1006
  %v1008 = vpop.f32.mrf.mxu0
  %1009 = vmatprep.mubr.bf16.mxu0 %v567
  %1010 = vmatmul.mubr.bf16.gmra.mxu0 %v566
  %v1011 = vpop.f32.mrf.mxu0
  %v1012 = vadd.f32 %v199, %v1011
  %v1013 = vpop.f32.mrf.mxu0
  %v1014 = vpop.f32.mrf.mxu0
  %v1015 = vadd.f32 %v199, %v1014
  %v1016 = vpop.f32.mrf.mxu0
  %1017 = vmatprep.mubr.bf16.mxu0 %v570
  %1018 = vmatmul.mubr.bf16.gmra.mxu0 %v569
  %v1019 = vpop.f32.mrf.mxu0
  %v1020 = vadd.f32 %v199, %v1019
  %v1021 = vpop.f32.mrf.mxu0
  %v1022 = vpop.f32.mrf.mxu0
  %v1023 = vadd.f32 %v199, %v1022
  %v1024 = vpop.f32.mrf.mxu0
  %1025 = vmatprep.mubr.bf16.mxu0 %v573
  %1026 = vmatmul.mubr.bf16.gmra.mxu0 %v572
  %v1027 = vpop.f32.mrf.mxu0
  %v1028 = vadd.f32 %v199, %v1027
  %v1029 = vpop.f32.mrf.mxu0
  %v1030 = vpop.f32.mrf.mxu0
  %v1031 = vadd.f32 %v199, %v1030
  %v1032 = vpop.f32.mrf.mxu0
  %1033 = vmatprep.mubr.bf16.mxu0 %v576
  %1034 = vmatmul.mubr.bf16.gmra.mxu0 %v575
  %v1035 = vpop.f32.mrf.mxu0
  %v1036 = vadd.f32 %v199, %v1035
  %v1037 = vpop.f32.mrf.mxu0
  %v1038 = vpop.f32.mrf.mxu0
  %v1039 = vadd.f32 %v199, %v1038
  %v1040 = vpop.f32.mrf.mxu0
  %1041 = vmatprep.mubr.bf16.mxu0 %v579
  %1042 = vmatmul.mubr.bf16.gmra.mxu0 %v578
  %v1043 = vpop.f32.mrf.mxu0
  %v1044 = vadd.f32 %v199, %v1043
  %v1045 = vpop.f32.mrf.mxu0
  %v1046 = vpop.f32.mrf.mxu0
  %v1047 = vadd.f32 %v199, %v1046
  %v1048 = vpop.f32.mrf.mxu0
  %1049 = vmatprep.mubr.bf16.mxu0 %v582
  %1050 = vmatmul.mubr.bf16.gmra.mxu0 %v581
  %v1051 = vpop.f32.mrf.mxu0
  %v1052 = vadd.f32 %v199, %v1051
  %v1053 = vpop.f32.mrf.mxu0
  %v1054 = vpop.f32.mrf.mxu0
  %v1055 = vadd.f32 %v199, %v1054
  %v1056 = vpop.f32.mrf.mxu0
  %1057 = vmatprep.mubr.bf16.mxu0 %v585
  %1058 = vmatmul.mubr.bf16.gmra.mxu0 %v584
  %v1059 = vpop.f32.mrf.mxu0
  %v1060 = vadd.f32 %v199, %v1059
  %v1061 = vpop.f32.mrf.mxu0
  %v1062 = vpop.f32.mrf.mxu0
  %v1063 = vadd.f32 %v199, %v1062
  %v1064 = vpop.f32.mrf.mxu0
  %1065 = vmatprep.mubr.bf16.mxu0 %v588
  %1066 = vmatmul.mubr.bf16.gmra.mxu0 %v587
  %v1067 = vpop.f32.mrf.mxu0
  %v1068 = vadd.f32 %v199, %v1067
  %v1069 = vpop.f32.mrf.mxu0
  %v1070 = vpop.f32.mrf.mxu0
  %v1071 = vadd.f32 %v199, %v1070
  %v1072 = vpop.f32.mrf.mxu0
  %1073 = vmatprep.mubr.bf16.mxu0 %v591
  %1074 = vmatmul.mubr.bf16.gmra.mxu0 %v590
  %v1075 = vpop.f32.mrf.mxu0
  %v1076 = vadd.f32 %v199, %v1075
  %v1077 = vpop.f32.mrf.mxu0
  %v1078 = vpop.f32.mrf.mxu0
  %v1079 = vadd.f32 %v199, %v1078
  %v1080 = vpop.f32.mrf.mxu0
  %1081 = vmatprep.mubr.bf16.mxu0 %v594
  %1082 = vmatmul.mubr.bf16.gmra.mxu0 %v593
  %v1083 = vpop.f32.mrf.mxu0
  %v1084 = vadd.f32 %v199, %v1083
  %v1085 = vpop.f32.mrf.mxu0
  %v1086 = vpop.f32.mrf.mxu0
  %v1087 = vadd.f32 %v199, %v1086
  %v1088 = vpop.f32.mrf.mxu0
  %1089 = vmatprep.mubr.bf16.mxu0 %v597
  %1090 = vmatmul.mubr.bf16.gmra.mxu0 %v596
  %v1091 = vpop.f32.mrf.mxu0
  %v1092 = vadd.f32 %v199, %v1091
  %v1093 = vpop.f32.mrf.mxu0
  %v1094 = vpop.f32.mrf.mxu0
  %v1095 = vadd.f32 %v199, %v1094
  %v1096 = vpop.f32.mrf.mxu0
  %1097 = vmatprep.mubr.bf16.mxu0 %v600
  %1098 = vmatmul.mubr.bf16.gmra.mxu0 %v599
  %v1099 = vpop.f32.mrf.mxu0
  %v1100 = vadd.f32 %v199, %v1099
  %v1101 = vpop.f32.mrf.mxu0
  %v1102 = vpop.f32.mrf.mxu0
  %v1103 = vadd.f32 %v199, %v1102
  %v1104 = vpop.f32.mrf.mxu0
  %1105 = vmatprep.mubr.bf16.mxu0 %v603
  %1106 = vmatmul.mubr.bf16.gmra.mxu0 %v602
  %v1107 = vpop.f32.mrf.mxu0
  %v1108 = vadd.f32 %v199, %v1107
  %v1109 = vpop.f32.mrf.mxu0
  %v1110 = vpop.f32.mrf.mxu0
  %v1111 = vadd.f32 %v199, %v1110
  %v1112 = vpop.f32.mrf.mxu0
  %1113 = vmatprep.mubr.bf16.mxu0 %v606
  %1114 = vmatmul.mubr.bf16.gmra.mxu0 %v605
  %v1115 = vpop.f32.mrf.mxu0
  %v1116 = vadd.f32 %v199, %v1115
  %v1117 = vpop.f32.mrf.mxu0
  %v1118 = vpop.f32.mrf.mxu0
  %v1119 = vadd.f32 %v199, %v1118
  %v1120 = vpop.f32.mrf.mxu0
  %1121 = vmatprep.mubr.bf16.mxu0 %v609
  %1122 = vmatmul.mubr.bf16.gmra.mxu0 %v608
  %v1123 = vpop.f32.mrf.mxu0
  %v1124 = vadd.f32 %v199, %v1123
  %v1125 = vpop.f32.mrf.mxu0
  %v1126 = vpop.f32.mrf.mxu0
  %v1127 = vadd.f32 %v199, %v1126
  %v1128 = vpop.f32.mrf.mxu0
  %1129 = vmatprep.mubr.bf16.mxu0 %v612
  %1130 = vmatmul.mubr.bf16.gmra.mxu0 %v611
  %v1131 = vpop.f32.mrf.mxu0
  %v1132 = vadd.f32 %v199, %v1131
  %v1133 = vpop.f32.mrf.mxu0
  %v1134 = vpop.f32.mrf.mxu0
  %v1135 = vadd.f32 %v199, %v1134
  %v1136 = vpop.f32.mrf.mxu0
  %1137 = vmatprep.mubr.bf16.mxu0 %v615
  %1138 = vmatmul.mubr.bf16.gmra.mxu0 %v614
  %v1139 = vpop.f32.mrf.mxu0
  %v1140 = vadd.f32 %v199, %v1139
  %v1141 = vpop.f32.mrf.mxu0
  %v1142 = vpop.f32.mrf.mxu0
  %v1143 = vadd.f32 %v199, %v1142
  %v1144 = vpop.f32.mrf.mxu0
  %1145 = vdwg.mxu0
  %1146 = vmatprep.subr.bf16.mxu0 0
  %1147 = vmatpush1.bf16.msra.mxu0 %v832
  %1148 = vmatprep.subr.bf16.mxu0 0
  %1149 = vmatpush1.bf16.msra.mxu0 %v831
  %1150 = vmatprep.subr.bf16.mxu0 0
  %1151 = vmatpush1.bf16.msra.mxu0 %v830
  %1152 = vmatprep.subr.bf16.mxu0 0
  %1153 = vmatpush1.bf16.msra.mxu0 %v829
  %1154 = vmatprep.subr.bf16.mxu0 0
  %1155 = vmatpush1.bf16.msra.mxu0 %v828
  %1156 = vmatprep.subr.bf16.mxu0 0
  %1157 = vmatpush1.bf16.msra.mxu0 %v827
  %1158 = vmatprep.subr.bf16.mxu0 0
  %1159 = vmatpush1.bf16.msra.mxu0 %v826
  %1160 = vmatprep.subr.bf16.mxu0 0
  %1161 = vmatpush1.bf16.msra.mxu0 %v825
  %1162 = vmatprep.subr.bf16.mxu0 0
  %1163 = vmatpush2.bf16.msra.mxu0 0
  %1164 = vmatprep.subr.bf16.mxu0 0
  %1165 = vmatpush2.bf16.msra.mxu0 0
  %1166 = vmatprep.subr.bf16.mxu0 0
  %1167 = vmatpush2.bf16.msra.mxu0 0
  %1168 = vmatprep.subr.bf16.mxu0 0
  %1169 = vmatpush2.bf16.msra.mxu0 0
  %1170 = vmatprep.subr.bf16.mxu0 0
  %1171 = vmatpush2.bf16.msra.mxu0 0
  %1172 = vmatprep.subr.bf16.mxu0 0
  %1173 = vmatpush2.bf16.msra.mxu0 0
  %1174 = vmatprep.subr.bf16.mxu0 0
  %1175 = vmatpush2.bf16.msra.mxu0 0
  %1176 = vmatprep.subr.bf16.mxu0 0
  %1177 = vmatpush2.bf16.msra.mxu0 0
  %1178 = vmatprep.mubr.bf16.mxu0 0
  %1179 = vmatmul.mubr.bf16.gmra.mxu0 %v523
  %v1180 = vpop.f32.mrf.mxu0
  %v1181 = vadd.f32 %v892, %v1180
  %v1182 = vpop.f32.mrf.mxu0
  %v1183 = vpop.f32.mrf.mxu0
  %v1184 = vadd.f32 %v895, %v1183
  %v1185 = vpop.f32.mrf.mxu0
  %1186 = vmatprep.mubr.bf16.mxu0 0
  %1187 = vmatmul.mubr.bf16.gmra.mxu0 %v526
  %v1188 = vpop.f32.mrf.mxu0
  %v1189 = vadd.f32 %v900, %v1188
  %v1190 = vpop.f32.mrf.mxu0
  %v1191 = vpop.f32.mrf.mxu0
  %v1192 = vadd.f32 %v903, %v1191
  %v1193 = vpop.f32.mrf.mxu0
  %1194 = vmatprep.mubr.bf16.mxu0 0
  %1195 = vmatmul.mubr.bf16.gmra.mxu0 %v529
  %v1196 = vpop.f32.mrf.mxu0
  %v1197 = vadd.f32 %v908, %v1196
  %v1198 = vpop.f32.mrf.mxu0
  %v1199 = vpop.f32.mrf.mxu0
  %v1200 = vadd.f32 %v911, %v1199
  %v1201 = vpop.f32.mrf.mxu0
  %1202 = vmatprep.mubr.bf16.mxu0 0
  %1203 = vmatmul.mubr.bf16.gmra.mxu0 %v532
  %v1204 = vpop.f32.mrf.mxu0
  %v1205 = vadd.f32 %v916, %v1204
  %v1206 = vpop.f32.mrf.mxu0
  %v1207 = vpop.f32.mrf.mxu0
  %v1208 = vadd.f32 %v919, %v1207
  %v1209 = vpop.f32.mrf.mxu0
  %1210 = vmatprep.mubr.bf16.mxu0 0
  %1211 = vmatmul.mubr.bf16.gmra.mxu0 %v535
  %v1212 = vpop.f32.mrf.mxu0
  %v1213 = vadd.f32 %v924, %v1212
  %v1214 = vpop.f32.mrf.mxu0
  %v1215 = vpop.f32.mrf.mxu0
  %v1216 = vadd.f32 %v927, %v1215
  %v1217 = vpop.f32.mrf.mxu0
  %1218 = vmatprep.mubr.bf16.mxu0 0
  %1219 = vmatmul.mubr.bf16.gmra.mxu0 %v538
  %v1220 = vpop.f32.mrf.mxu0
  %v1221 = vadd.f32 %v932, %v1220
  %v1222 = vpop.f32.mrf.mxu0
  %v1223 = vpop.f32.mrf.mxu0
  %v1224 = vadd.f32 %v935, %v1223
  %v1225 = vpop.f32.mrf.mxu0
  %1226 = vmatprep.mubr.bf16.mxu0 0
  %1227 = vmatmul.mubr.bf16.gmra.mxu0 %v541
  %v1228 = vpop.f32.mrf.mxu0
  %v1229 = vadd.f32 %v940, %v1228
  %v1230 = vpop.f32.mrf.mxu0
  %v1231 = vpop.f32.mrf.mxu0
  %v1232 = vadd.f32 %v943, %v1231
  %v1233 = vpop.f32.mrf.mxu0
  %1234 = vmatprep.mubr.bf16.mxu0 0
  %1235 = vmatmul.mubr.bf16.gmra.mxu0 %v544
  %v1236 = vpop.f32.mrf.mxu0
  %v1237 = vadd.f32 %v948, %v1236
  %v1238 = vpop.f32.mrf.mxu0
  %v1239 = vpop.f32.mrf.mxu0
  %v1240 = vadd.f32 %v951, %v1239
  %v1241 = vpop.f32.mrf.mxu0
  %1242 = vmatprep.mubr.bf16.mxu0 0
  %1243 = vmatmul.mubr.bf16.gmra.mxu0 %v547
  %v1244 = vpop.f32.mrf.mxu0
  %v1245 = vadd.f32 %v956, %v1244
  %v1246 = vpop.f32.mrf.mxu0
  %v1247 = vpop.f32.mrf.mxu0
  %v1248 = vadd.f32 %v959, %v1247
  %v1249 = vpop.f32.mrf.mxu0
  %1250 = vmatprep.mubr.bf16.mxu0 0
  %1251 = vmatmul.mubr.bf16.gmra.mxu0 %v550
  %v1252 = vpop.f32.mrf.mxu0
  %v1253 = vadd.f32 %v964, %v1252
  %v1254 = vpop.f32.mrf.mxu0
  %v1255 = vpop.f32.mrf.mxu0
  %v1256 = vadd.f32 %v967, %v1255
  %v1257 = vpop.f32.mrf.mxu0
  %1258 = vmatprep.mubr.bf16.mxu0 0
  %1259 = vmatmul.mubr.bf16.gmra.mxu0 %v553
  %v1260 = vpop.f32.mrf.mxu0
  %v1261 = vadd.f32 %v972, %v1260
  %v1262 = vpop.f32.mrf.mxu0
  %v1263 = vpop.f32.mrf.mxu0
  %v1264 = vadd.f32 %v975, %v1263
  %v1265 = vpop.f32.mrf.mxu0
  %1266 = vmatprep.mubr.bf16.mxu0 0
  %1267 = vmatmul.mubr.bf16.gmra.mxu0 %v556
  %v1268 = vpop.f32.mrf.mxu0
  %v1269 = vadd.f32 %v980, %v1268
  %v1270 = vpop.f32.mrf.mxu0
  %v1271 = vpop.f32.mrf.mxu0
  %v1272 = vadd.f32 %v983, %v1271
  %v1273 = vpop.f32.mrf.mxu0
  %1274 = vmatprep.mubr.bf16.mxu0 0
  %1275 = vmatmul.mubr.bf16.gmra.mxu0 %v559
  %v1276 = vpop.f32.mrf.mxu0
  %v1277 = vadd.f32 %v988, %v1276
  %v1278 = vpop.f32.mrf.mxu0
  %v1279 = vpop.f32.mrf.mxu0
  %v1280 = vadd.f32 %v991, %v1279
  %v1281 = vpop.f32.mrf.mxu0
  %1282 = vmatprep.mubr.bf16.mxu0 0
  %1283 = vmatmul.mubr.bf16.gmra.mxu0 %v562
  %v1284 = vpop.f32.mrf.mxu0
  %v1285 = vadd.f32 %v996, %v1284
  %v1286 = vpop.f32.mrf.mxu0
  %v1287 = vpop.f32.mrf.mxu0
  %v1288 = vadd.f32 %v999, %v1287
  %v1289 = vpop.f32.mrf.mxu0
  %1290 = vmatprep.mubr.bf16.mxu0 0
  %1291 = vmatmul.mubr.bf16.gmra.mxu0 %v565
  %v1292 = vpop.f32.mrf.mxu0
  %v1293 = vadd.f32 %v1004, %v1292
  %v1294 = vpop.f32.mrf.mxu0
  %v1295 = vpop.f32.mrf.mxu0
  %v1296 = vadd.f32 %v1007, %v1295
  %v1297 = vpop.f32.mrf.mxu0
  %1298 = vmatprep.mubr.bf16.mxu0 0
  %1299 = vmatmul.mubr.bf16.gmra.mxu0 %v568
  %v1300 = vpop.f32.mrf.mxu0
  %v1301 = vadd.f32 %v1012, %v1300
  %v1302 = vpop.f32.mrf.mxu0
  %v1303 = vpop.f32.mrf.mxu0
  %v1304 = vadd.f32 %v1015, %v1303
  %v1305 = vpop.f32.mrf.mxu0
  %1306 = vmatprep.mubr.bf16.mxu0 0
  %1307 = vmatmul.mubr.bf16.gmra.mxu0 %v571
  %v1308 = vpop.f32.mrf.mxu0
  %v1309 = vadd.f32 %v1020, %v1308
  %v1310 = vpop.f32.mrf.mxu0
  %v1311 = vpop.f32.mrf.mxu0
  %v1312 = vadd.f32 %v1023, %v1311
  %v1313 = vpop.f32.mrf.mxu0
  %1314 = vmatprep.mubr.bf16.mxu0 0
  %1315 = vmatmul.mubr.bf16.gmra.mxu0 %v574
  %v1316 = vpop.f32.mrf.mxu0
  %v1317 = vadd.f32 %v1028, %v1316
  %v1318 = vpop.f32.mrf.mxu0
  %v1319 = vpop.f32.mrf.mxu0
  %v1320 = vadd.f32 %v1031, %v1319
  %v1321 = vpop.f32.mrf.mxu0
  %1322 = vmatprep.mubr.bf16.mxu0 0
  %1323 = vmatmul.mubr.bf16.gmra.mxu0 %v577
  %v1324 = vpop.f32.mrf.mxu0
  %v1325 = vadd.f32 %v1036, %v1324
  %v1326 = vpop.f32.mrf.mxu0
  %v1327 = vpop.f32.mrf.mxu0
  %v1328 = vadd.f32 %v1039, %v1327
  %v1329 = vpop.f32.mrf.mxu0
  %1330 = vmatprep.mubr.bf16.mxu0 0
  %1331 = vmatmul.mubr.bf16.gmra.mxu0 %v580
  %v1332 = vpop.f32.mrf.mxu0
  %v1333 = vadd.f32 %v1044, %v1332
  %v1334 = vpop.f32.mrf.mxu0
  %v1335 = vpop.f32.mrf.mxu0
  %v1336 = vadd.f32 %v1047, %v1335
  %v1337 = vpop.f32.mrf.mxu0
  %1338 = vmatprep.mubr.bf16.mxu0 0
  %1339 = vmatmul.mubr.bf16.gmra.mxu0 %v583
  %v1340 = vpop.f32.mrf.mxu0
  %v1341 = vadd.f32 %v1052, %v1340
  %v1342 = vpop.f32.mrf.mxu0
  %v1343 = vpop.f32.mrf.mxu0
  %v1344 = vadd.f32 %v1055, %v1343
  %v1345 = vpop.f32.mrf.mxu0
  %1346 = vmatprep.mubr.bf16.mxu0 0
  %1347 = vmatmul.mubr.bf16.gmra.mxu0 %v586
  %v1348 = vpop.f32.mrf.mxu0
  %v1349 = vadd.f32 %v1060, %v1348
  %v1350 = vpop.f32.mrf.mxu0
  %v1351 = vpop.f32.mrf.mxu0
  %v1352 = vadd.f32 %v1063, %v1351
  %v1353 = vpop.f32.mrf.mxu0
  %1354 = vmatprep.mubr.bf16.mxu0 0
  %1355 = vmatmul.mubr.bf16.gmra.mxu0 %v589
  %v1356 = vpop.f32.mrf.mxu0
  %v1357 = vadd.f32 %v1068, %v1356
  %v1358 = vpop.f32.mrf.mxu0
  %v1359 = vpop.f32.mrf.mxu0
  %v1360 = vadd.f32 %v1071, %v1359
  %v1361 = vpop.f32.mrf.mxu0
  %1362 = vmatprep.mubr.bf16.mxu0 0
  %1363 = vmatmul.mubr.bf16.gmra.mxu0 %v592
  %v1364 = vpop.f32.mrf.mxu0
  %v1365 = vadd.f32 %v1076, %v1364
  %v1366 = vpop.f32.mrf.mxu0
  %v1367 = vpop.f32.mrf.mxu0
  %v1368 = vadd.f32 %v1079, %v1367
  %v1369 = vpop.f32.mrf.mxu0
  %1370 = vmatprep.mubr.bf16.mxu0 0
  %1371 = vmatmul.mubr.bf16.gmra.mxu0 %v595
  %v1372 = vpop.f32.mrf.mxu0
  %v1373 = vadd.f32 %v1084, %v1372
  %v1374 = vpop.f32.mrf.mxu0
  %v1375 = vpop.f32.mrf.mxu0
  %v1376 = vadd.f32 %v1087, %v1375
  %v1377 = vpop.f32.mrf.mxu0
  %1378 = vmatprep.mubr.bf16.mxu0 0
  %1379 = vmatmul.mubr.bf16.gmra.mxu0 %v598
  %v1380 = vpop.f32.mrf.mxu0
  %v1381 = vadd.f32 %v1092, %v1380
  %v1382 = vpop.f32.mrf.mxu0
  %v1383 = vpop.f32.mrf.mxu0
  %v1384 = vadd.f32 %v1095, %v1383
  %v1385 = vpop.f32.mrf.mxu0
  %1386 = vmatprep.mubr.bf16.mxu0 0
  %1387 = vmatmul.mubr.bf16.gmra.mxu0 %v601
  %v1388 = vpop.f32.mrf.mxu0
  %v1389 = vadd.f32 %v1100, %v1388
  %v1390 = vpop.f32.mrf.mxu0
  %v1391 = vpop.f32.mrf.mxu0
  %v1392 = vadd.f32 %v1103, %v1391
  %v1393 = vpop.f32.mrf.mxu0
  %1394 = vmatprep.mubr.bf16.mxu0 0
  %1395 = vmatmul.mubr.bf16.gmra.mxu0 %v604
  %v1396 = vpop.f32.mrf.mxu0
  %v1397 = vadd.f32 %v1108, %v1396
  %v1398 = vpop.f32.mrf.mxu0
  %v1399 = vpop.f32.mrf.mxu0
  %v1400 = vadd.f32 %v1111, %v1399
  %v1401 = vpop.f32.mrf.mxu0
  %1402 = vmatprep.mubr.bf16.mxu0 0
  %1403 = vmatmul.mubr.bf16.gmra.mxu0 %v607
  %v1404 = vpop.f32.mrf.mxu0
  %v1405 = vadd.f32 %v1116, %v1404
  %v1406 = vpop.f32.mrf.mxu0
  %v1407 = vpop.f32.mrf.mxu0
  %v1408 = vadd.f32 %v1119, %v1407
  %v1409 = vpop.f32.mrf.mxu0
  %1410 = vmatprep.mubr.bf16.mxu0 0
  %1411 = vmatmul.mubr.bf16.gmra.mxu0 %v610
  %v1412 = vpop.f32.mrf.mxu0
  %v1413 = vadd.f32 %v1124, %v1412
  %v1414 = vpop.f32.mrf.mxu0
  %v1415 = vpop.f32.mrf.mxu0
  %v1416 = vadd.f32 %v1127, %v1415
  %v1417 = vpop.f32.mrf.mxu0
  %1418 = vmatprep.mubr.bf16.mxu0 0
  %1419 = vmatmul.mubr.bf16.gmra.mxu0 %v613
  %v1420 = vpop.f32.mrf.mxu0
  %v1421 = vadd.f32 %v1132, %v1420
  %v1422 = vpop.f32.mrf.mxu0
  %v1423 = vpop.f32.mrf.mxu0
  %v1424 = vadd.f32 %v1135, %v1423
  %v1425 = vpop.f32.mrf.mxu0
  %1426 = vmatprep.mubr.bf16.mxu0 0
  %1427 = vmatmul.mubr.bf16.gmra.mxu0 %v616
  %v1428 = vpop.f32.mrf.mxu0
  %v1429 = vadd.f32 %v1140, %v1428
  %v1430 = vpop.f32.mrf.mxu0
  %v1431 = vpop.f32.mrf.mxu0
  %v1432 = vadd.f32 %v1143, %v1431
  %v1433 = vpop.f32.mrf.mxu0
  %1434 = vdwg.mxu0
  %v1435 = vxor.u32 %v1181, 2147483648
  %v1436 = vxor.u32 %v1184, 2147483648
  %v1437 = vxor.u32 %v1189, 2147483648
  %v1438 = vxor.u32 %v1192, 2147483648
  %v1439 = vxor.u32 %v1197, 2147483648
  %v1440 = vxor.u32 %v1200, 2147483648
  %v1441 = vxor.u32 %v1205, 2147483648
  %v1442 = vxor.u32 %v1208, 2147483648
  %v1443 = vxor.u32 %v1213, 2147483648
  %v1444 = vxor.u32 %v1216, 2147483648
  %v1445 = vxor.u32 %v1221, 2147483648
  %v1446 = vxor.u32 %v1224, 2147483648
  %v1447 = vxor.u32 %v1229, 2147483648
  %v1448 = vxor.u32 %v1232, 2147483648
  %v1449 = vxor.u32 %v1237, 2147483648
  %v1450 = vxor.u32 %v1240, 2147483648
  %v1451 = vxor.u32 %v1245, 2147483648
  %v1452 = vxor.u32 %v1248, 2147483648
  %v1453 = vxor.u32 %v1253, 2147483648
  %v1454 = vxor.u32 %v1256, 2147483648
  %v1455 = vxor.u32 %v1261, 2147483648
  %v1456 = vxor.u32 %v1264, 2147483648
  %v1457 = vxor.u32 %v1269, 2147483648
  %v1458 = vxor.u32 %v1272, 2147483648
  %v1459 = vxor.u32 %v1277, 2147483648
  %v1460 = vxor.u32 %v1280, 2147483648
  %v1461 = vxor.u32 %v1285, 2147483648
  %v1462 = vxor.u32 %v1288, 2147483648
  %v1463 = vxor.u32 %v1293, 2147483648
  %v1464 = vxor.u32 %v1296, 2147483648
  %v1465 = vxor.u32 %v1301, 2147483648
  %v1466 = vxor.u32 %v1304, 2147483648
  %v1467 = vxor.u32 %v1309, 2147483648
  %v1468 = vxor.u32 %v1312, 2147483648
  %v1469 = vxor.u32 %v1317, 2147483648
  %v1470 = vxor.u32 %v1320, 2147483648
  %v1471 = vxor.u32 %v1325, 2147483648
  %v1472 = vxor.u32 %v1328, 2147483648
  %v1473 = vxor.u32 %v1333, 2147483648
  %v1474 = vxor.u32 %v1336, 2147483648
  %v1475 = vxor.u32 %v1341, 2147483648
  %v1476 = vxor.u32 %v1344, 2147483648
  %v1477 = vxor.u32 %v1349, 2147483648
  %v1478 = vxor.u32 %v1352, 2147483648
  %v1479 = vxor.u32 %v1357, 2147483648
  %v1480 = vxor.u32 %v1360, 2147483648
  %v1481 = vxor.u32 %v1365, 2147483648
  %v1482 = vxor.u32 %v1368, 2147483648
  %v1483 = vxor.u32 %v1373, 2147483648
  %v1484 = vxor.u32 %v1376, 2147483648
  %v1485 = vxor.u32 %v1381, 2147483648
  %v1486 = vxor.u32 %v1384, 2147483648
  %v1487 = vxor.u32 %v1389, 2147483648
  %v1488 = vxor.u32 %v1392, 2147483648
  %v1489 = vxor.u32 %v1397, 2147483648
  %v1490 = vxor.u32 %v1400, 2147483648
  %v1491 = vxor.u32 %v1405, 2147483648
  %v1492 = vxor.u32 %v1408, 2147483648
  %v1493 = vxor.u32 %v1413, 2147483648
  %v1494 = vxor.u32 %v1416, 2147483648
  %v1495 = vxor.u32 %v1421, 2147483648
  %v1496 = vxor.u32 %v1424, 2147483648
  %v1497 = vxor.u32 %v1429, 2147483648
  %v1498 = vxor.u32 %v1432, 2147483648
  %v1499 = vmul.f32 %v1435, 1.442695
  %v1500 = vpow.pop %v1499
  %v1501 = vmul.f32 %v1436, 1.442695
  %v1502 = vpow.pop %v1501
  %v1503 = vmul.f32 %v1437, 1.442695
  %v1504 = vpow.pop %v1503
  %v1505 = vmul.f32 %v1438, 1.442695
  %v1506 = vpow.pop %v1505
  %v1507 = vmul.f32 %v1439, 1.442695
  %v1508 = vpow.pop %v1507
  %v1509 = vmul.f32 %v1440, 1.442695
  %v1510 = vpow.pop %v1509
  %v1511 = vmul.f32 %v1441, 1.442695
  %v1512 = vpow.pop %v1511
  %v1513 = vmul.f32 %v1442, 1.442695
  %v1514 = vpow.pop %v1513
  %v1515 = vmul.f32 %v1443, 1.442695
  %v1516 = vpow.pop %v1515
  %v1517 = vmul.f32 %v1444, 1.442695
  %v1518 = vpow.pop %v1517
  %v1519 = vmul.f32 %v1445, 1.442695
  %v1520 = vpow.pop %v1519
  %v1521 = vmul.f32 %v1446, 1.442695
  %v1522 = vpow.pop %v1521
  %v1523 = vmul.f32 %v1447, 1.442695
  %v1524 = vpow.pop %v1523
  %v1525 = vmul.f32 %v1448, 1.442695
  %v1526 = vpow.pop %v1525
  %v1527 = vmul.f32 %v1449, 1.442695
  %v1528 = vpow.pop %v1527
  %v1529 = vmul.f32 %v1450, 1.442695
  %v1530 = vpow.pop %v1529
  %v1531 = vmul.f32 %v1451, 1.442695
  %v1532 = vpow.pop %v1531
  %v1533 = vmul.f32 %v1452, 1.442695
  %v1534 = vpow.pop %v1533
  %v1535 = vmul.f32 %v1453, 1.442695
  %v1536 = vpow.pop %v1535
  %v1537 = vmul.f32 %v1454, 1.442695
  %v1538 = vpow.pop %v1537
  %v1539 = vmul.f32 %v1455, 1.442695
  %v1540 = vpow.pop %v1539
  %v1541 = vmul.f32 %v1456, 1.442695
  %v1542 = vpow.pop %v1541
  %v1543 = vmul.f32 %v1457, 1.442695
  %v1544 = vpow.pop %v1543
  %v1545 = vmul.f32 %v1458, 1.442695
  %v1546 = vpow.pop %v1545
  %v1547 = vmul.f32 %v1459, 1.442695
  %v1548 = vpow.pop %v1547
  %v1549 = vmul.f32 %v1460, 1.442695
  %v1550 = vpow.pop %v1549
  %v1551 = vmul.f32 %v1461, 1.442695
  %v1552 = vpow.pop %v1551
  %v1553 = vmul.f32 %v1462, 1.442695
  %v1554 = vpow.pop %v1553
  %v1555 = vmul.f32 %v1463, 1.442695
  %v1556 = vpow.pop %v1555
  %v1557 = vmul.f32 %v1464, 1.442695
  %v1558 = vpow.pop %v1557
  %v1559 = vmul.f32 %v1465, 1.442695
  %v1560 = vpow.pop %v1559
  %v1561 = vmul.f32 %v1466, 1.442695
  %v1562 = vpow.pop %v1561
  %v1563 = vmul.f32 %v1467, 1.442695
  %v1564 = vpow.pop %v1563
  %v1565 = vmul.f32 %v1468, 1.442695
  %v1566 = vpow.pop %v1565
  %v1567 = vmul.f32 %v1469, 1.442695
  %v1568 = vpow.pop %v1567
  %v1569 = vmul.f32 %v1470, 1.442695
  %v1570 = vpow.pop %v1569
  %v1571 = vmul.f32 %v1471, 1.442695
  %v1572 = vpow.pop %v1571
  %v1573 = vmul.f32 %v1472, 1.442695
  %v1574 = vpow.pop %v1573
  %v1575 = vmul.f32 %v1473, 1.442695
  %v1576 = vpow.pop %v1575
  %v1577 = vmul.f32 %v1474, 1.442695
  %v1578 = vpow.pop %v1577
  %v1579 = vmul.f32 %v1475, 1.442695
  %v1580 = vpow.pop %v1579
  %v1581 = vmul.f32 %v1476, 1.442695
  %v1582 = vpow.pop %v1581
  %v1583 = vmul.f32 %v1477, 1.442695
  %v1584 = vpow.pop %v1583
  %v1585 = vmul.f32 %v1478, 1.442695
  %v1586 = vpow.pop %v1585
  %v1587 = vmul.f32 %v1479, 1.442695
  %v1588 = vpow.pop %v1587
  %v1589 = vmul.f32 %v1480, 1.442695
  %v1590 = vpow.pop %v1589
  %v1591 = vmul.f32 %v1481, 1.442695
  %v1592 = vpow.pop %v1591
  %v1593 = vmul.f32 %v1482, 1.442695
  %v1594 = vpow.pop %v1593
  %v1595 = vmul.f32 %v1483, 1.442695
  %v1596 = vpow.pop %v1595
  %v1597 = vmul.f32 %v1484, 1.442695
  %v1598 = vpow.pop %v1597
  %v1599 = vmul.f32 %v1485, 1.442695
  %v1600 = vpow.pop %v1599
  %v1601 = vmul.f32 %v1486, 1.442695
  %v1602 = vpow.pop %v1601
  %v1603 = vmul.f32 %v1487, 1.442695
  %v1604 = vpow.pop %v1603
  %v1605 = vmul.f32 %v1488, 1.442695
  %v1606 = vpow.pop %v1605
  %v1607 = vmul.f32 %v1489, 1.442695
  %v1608 = vpow.pop %v1607
  %v1609 = vmul.f32 %v1490, 1.442695
  %v1610 = vpow.pop %v1609
  %v1611 = vmul.f32 %v1491, 1.442695
  %v1612 = vpow.pop %v1611
  %v1613 = vmul.f32 %v1492, 1.442695
  %v1614 = vpow.pop %v1613
  %v1615 = vmul.f32 %v1493, 1.442695
  %v1616 = vpow.pop %v1615
  %v1617 = vmul.f32 %v1494, 1.442695
  %v1618 = vpow.pop %v1617
  %v1619 = vmul.f32 %v1495, 1.442695
  %v1620 = vpow.pop %v1619
  %v1621 = vmul.f32 %v1496, 1.442695
  %v1622 = vpow.pop %v1621
  %v1623 = vmul.f32 %v1497, 1.442695
  %v1624 = vpow.pop %v1623
  %v1625 = vmul.f32 %v1498, 1.442695
  %v1626 = vpow.pop %v1625
  %v1627 = vadd.f32 %v1500, 1.0
  %v1628 = vadd.f32 %v1502, 1.0
  %v1629 = vadd.f32 %v1504, 1.0
  %v1630 = vadd.f32 %v1506, 1.0
  %v1631 = vadd.f32 %v1508, 1.0
  %v1632 = vadd.f32 %v1510, 1.0
  %v1633 = vadd.f32 %v1512, 1.0
  %v1634 = vadd.f32 %v1514, 1.0
  %v1635 = vadd.f32 %v1516, 1.0
  %v1636 = vadd.f32 %v1518, 1.0
  %v1637 = vadd.f32 %v1520, 1.0
  %v1638 = vadd.f32 %v1522, 1.0
  %v1639 = vadd.f32 %v1524, 1.0
  %v1640 = vadd.f32 %v1526, 1.0
  %v1641 = vadd.f32 %v1528, 1.0
  %v1642 = vadd.f32 %v1530, 1.0
  %v1643 = vadd.f32 %v1532, 1.0
  %v1644 = vadd.f32 %v1534, 1.0
  %v1645 = vadd.f32 %v1536, 1.0
  %v1646 = vadd.f32 %v1538, 1.0
  %v1647 = vadd.f32 %v1540, 1.0
  %v1648 = vadd.f32 %v1542, 1.0
  %v1649 = vadd.f32 %v1544, 1.0
  %v1650 = vadd.f32 %v1546, 1.0
  %v1651 = vadd.f32 %v1548, 1.0
  %v1652 = vadd.f32 %v1550, 1.0
  %v1653 = vadd.f32 %v1552, 1.0
  %v1654 = vadd.f32 %v1554, 1.0
  %v1655 = vadd.f32 %v1556, 1.0
  %v1656 = vadd.f32 %v1558, 1.0
  %v1657 = vadd.f32 %v1560, 1.0
  %v1658 = vadd.f32 %v1562, 1.0
  %v1659 = vadd.f32 %v1564, 1.0
  %v1660 = vadd.f32 %v1566, 1.0
  %v1661 = vadd.f32 %v1568, 1.0
  %v1662 = vadd.f32 %v1570, 1.0
  %v1663 = vadd.f32 %v1572, 1.0
  %v1664 = vadd.f32 %v1574, 1.0
  %v1665 = vadd.f32 %v1576, 1.0
  %v1666 = vadd.f32 %v1578, 1.0
  %v1667 = vadd.f32 %v1580, 1.0
  %v1668 = vadd.f32 %v1582, 1.0
  %v1669 = vadd.f32 %v1584, 1.0
  %v1670 = vadd.f32 %v1586, 1.0
  %v1671 = vadd.f32 %v1588, 1.0
  %v1672 = vadd.f32 %v1590, 1.0
  %v1673 = vadd.f32 %v1592, 1.0
  %v1674 = vadd.f32 %v1594, 1.0
  %v1675 = vadd.f32 %v1596, 1.0
  %v1676 = vadd.f32 %v1598, 1.0
  %v1677 = vadd.f32 %v1600, 1.0
  %v1678 = vadd.f32 %v1602, 1.0
  %v1679 = vadd.f32 %v1604, 1.0
  %v1680 = vadd.f32 %v1606, 1.0
  %v1681 = vadd.f32 %v1608, 1.0
  %v1682 = vadd.f32 %v1610, 1.0
  %v1683 = vadd.f32 %v1612, 1.0
  %v1684 = vadd.f32 %v1614, 1.0
  %v1685 = vadd.f32 %v1616, 1.0
  %v1686 = vadd.f32 %v1618, 1.0
  %v1687 = vadd.f32 %v1620, 1.0
  %v1688 = vadd.f32 %v1622, 1.0
  %v1689 = vadd.f32 %v1624, 1.0
  %v1690 = vadd.f32 %v1626, 1.0
  %v1691 = vrcp.pop %v1627
  %v1692 = vmul.f32 1.0, %v1691
  %v1693 = vrcp.pop %v1628
  %v1694 = vmul.f32 1.0, %v1693
  %v1695 = vrcp.pop %v1629
  %v1696 = vmul.f32 1.0, %v1695
  %v1697 = vrcp.pop %v1630
  %v1698 = vmul.f32 1.0, %v1697
  %v1699 = vrcp.pop %v1631
  %v1700 = vmul.f32 1.0, %v1699
  %v1701 = vrcp.pop %v1632
  %v1702 = vmul.f32 1.0, %v1701
  %v1703 = vrcp.pop %v1633
  %v1704 = vmul.f32 1.0, %v1703
  %v1705 = vrcp.pop %v1634
  %v1706 = vmul.f32 1.0, %v1705
  %v1707 = vrcp.pop %v1635
  %v1708 = vmul.f32 1.0, %v1707
  %v1709 = vrcp.pop %v1636
  %v1710 = vmul.f32 1.0, %v1709
  %v1711 = vrcp.pop %v1637
  %v1712 = vmul.f32 1.0, %v1711
  %v1713 = vrcp.pop %v1638
  %v1714 = vmul.f32 1.0, %v1713
  %v1715 = vrcp.pop %v1639
  %v1716 = vmul.f32 1.0, %v1715
  %v1717 = vrcp.pop %v1640
  %v1718 = vmul.f32 1.0, %v1717
  %v1719 = vrcp.pop %v1641
  %v1720 = vmul.f32 1.0, %v1719
  %v1721 = vrcp.pop %v1642
  %v1722 = vmul.f32 1.0, %v1721
  %v1723 = vrcp.pop %v1643
  %v1724 = vmul.f32 1.0, %v1723
  %v1725 = vrcp.pop %v1644
  %v1726 = vmul.f32 1.0, %v1725
  %v1727 = vrcp.pop %v1645
  %v1728 = vmul.f32 1.0, %v1727
  %v1729 = vrcp.pop %v1646
  %v1730 = vmul.f32 1.0, %v1729
  %v1731 = vrcp.pop %v1647
  %v1732 = vmul.f32 1.0, %v1731
  %v1733 = vrcp.pop %v1648
  %v1734 = vmul.f32 1.0, %v1733
  %v1735 = vrcp.pop %v1649
  %v1736 = vmul.f32 1.0, %v1735
  %v1737 = vrcp.pop %v1650
  %v1738 = vmul.f32 1.0, %v1737
  %v1739 = vrcp.pop %v1651
  %v1740 = vmul.f32 1.0, %v1739
  %v1741 = vrcp.pop %v1652
  %v1742 = vmul.f32 1.0, %v1741
  %v1743 = vrcp.pop %v1653
  %v1744 = vmul.f32 1.0, %v1743
  %v1745 = vrcp.pop %v1654
  %v1746 = vmul.f32 1.0, %v1745
  %v1747 = vrcp.pop %v1655
  %v1748 = vmul.f32 1.0, %v1747
  %v1749 = vrcp.pop %v1656
  %v1750 = vmul.f32 1.0, %v1749
  %v1751 = vrcp.pop %v1657
  %v1752 = vmul.f32 1.0, %v1751
  %v1753 = vrcp.pop %v1658
  %v1754 = vmul.f32 1.0, %v1753
  %v1755 = vrcp.pop %v1659
  %v1756 = vmul.f32 1.0, %v1755
  %v1757 = vrcp.pop %v1660
  %v1758 = vmul.f32 1.0, %v1757
  %v1759 = vrcp.pop %v1661
  %v1760 = vmul.f32 1.0, %v1759
  %v1761 = vrcp.pop %v1662
  %v1762 = vmul.f32 1.0, %v1761
  %v1763 = vrcp.pop %v1663
  %v1764 = vmul.f32 1.0, %v1763
  %v1765 = vrcp.pop %v1664
  %v1766 = vmul.f32 1.0, %v1765
  %v1767 = vrcp.pop %v1665
  %v1768 = vmul.f32 1.0, %v1767
  %v1769 = vrcp.pop %v1666
  %v1770 = vmul.f32 1.0, %v1769
  %v1771 = vrcp.pop %v1667
  %v1772 = vmul.f32 1.0, %v1771
  %v1773 = vrcp.pop %v1668
  %v1774 = vmul.f32 1.0, %v1773
  %v1775 = vrcp.pop %v1669
  %v1776 = vmul.f32 1.0, %v1775
  %v1777 = vrcp.pop %v1670
  %v1778 = vmul.f32 1.0, %v1777
  %v1779 = vrcp.pop %v1671
  %v1780 = vmul.f32 1.0, %v1779
  %v1781 = vrcp.pop %v1672
  %v1782 = vmul.f32 1.0, %v1781
  %v1783 = vrcp.pop %v1673
  %v1784 = vmul.f32 1.0, %v1783
  %v1785 = vrcp.pop %v1674
  %v1786 = vmul.f32 1.0, %v1785
  %v1787 = vrcp.pop %v1675
  %v1788 = vmul.f32 1.0, %v1787
  %v1789 = vrcp.pop %v1676
  %v1790 = vmul.f32 1.0, %v1789
  %v1791 = vrcp.pop %v1677
  %v1792 = vmul.f32 1.0, %v1791
  %v1793 = vrcp.pop %v1678
  %v1794 = vmul.f32 1.0, %v1793
  %v1795 = vrcp.pop %v1679
  %v1796 = vmul.f32 1.0, %v1795
  %v1797 = vrcp.pop %v1680
  %v1798 = vmul.f32 1.0, %v1797
  %v1799 = vrcp.pop %v1681
  %v1800 = vmul.f32 1.0, %v1799
  %v1801 = vrcp.pop %v1682
  %v1802 = vmul.f32 1.0, %v1801
  %v1803 = vrcp.pop %v1683
  %v1804 = vmul.f32 1.0, %v1803
  %v1805 = vrcp.pop %v1684
  %v1806 = vmul.f32 1.0, %v1805
  %v1807 = vrcp.pop %v1685
  %v1808 = vmul.f32 1.0, %v1807
  %v1809 = vrcp.pop %v1686
  %v1810 = vmul.f32 1.0, %v1809
  %v1811 = vrcp.pop %v1687
  %v1812 = vmul.f32 1.0, %v1811
  %v1813 = vrcp.pop %v1688
  %v1814 = vmul.f32 1.0, %v1813
  %v1815 = vrcp.pop %v1689
  %v1816 = vmul.f32 1.0, %v1815
  %v1817 = vrcp.pop %v1690
  %v1818 = vmul.f32 1.0, %v1817
  %v1819 = vmul.f32 %v1692, 2.0
  %v1820 = vmul.f32 %v1694, 2.0
  %v1821 = vmul.f32 %v1696, 2.0
  %v1822 = vmul.f32 %v1698, 2.0
  %v1823 = vmul.f32 %v1700, 2.0
  %v1824 = vmul.f32 %v1702, 2.0
  %v1825 = vmul.f32 %v1704, 2.0
  %v1826 = vmul.f32 %v1706, 2.0
  %v1827 = vmul.f32 %v1708, 2.0
  %v1828 = vmul.f32 %v1710, 2.0
  %v1829 = vmul.f32 %v1712, 2.0
  %v1830 = vmul.f32 %v1714, 2.0
  %v1831 = vmul.f32 %v1716, 2.0
  %v1832 = vmul.f32 %v1718, 2.0
  %v1833 = vmul.f32 %v1720, 2.0
  %v1834 = vmul.f32 %v1722, 2.0
  %v1835 = vmul.f32 %v1724, 2.0
  %v1836 = vmul.f32 %v1726, 2.0
  %v1837 = vmul.f32 %v1728, 2.0
  %v1838 = vmul.f32 %v1730, 2.0
  %v1839 = vmul.f32 %v1732, 2.0
  %v1840 = vmul.f32 %v1734, 2.0
  %v1841 = vmul.f32 %v1736, 2.0
  %v1842 = vmul.f32 %v1738, 2.0
  %v1843 = vmul.f32 %v1740, 2.0
  %v1844 = vmul.f32 %v1742, 2.0
  %v1845 = vmul.f32 %v1744, 2.0
  %v1846 = vmul.f32 %v1746, 2.0
  %v1847 = vmul.f32 %v1748, 2.0
  %v1848 = vmul.f32 %v1750, 2.0
  %v1849 = vmul.f32 %v1752, 2.0
  %v1850 = vmul.f32 %v1754, 2.0
  %v1851 = vmul.f32 %v1756, 2.0
  %v1852 = vmul.f32 %v1758, 2.0
  %v1853 = vmul.f32 %v1760, 2.0
  %v1854 = vmul.f32 %v1762, 2.0
  %v1855 = vmul.f32 %v1764, 2.0
  %v1856 = vmul.f32 %v1766, 2.0
  %v1857 = vmul.f32 %v1768, 2.0
  %v1858 = vmul.f32 %v1770, 2.0
  %v1859 = vmul.f32 %v1772, 2.0
  %v1860 = vmul.f32 %v1774, 2.0
  %v1861 = vmul.f32 %v1776, 2.0
  %v1862 = vmul.f32 %v1778, 2.0
  %v1863 = vmul.f32 %v1780, 2.0
  %v1864 = vmul.f32 %v1782, 2.0
  %v1865 = vmul.f32 %v1784, 2.0
  %v1866 = vmul.f32 %v1786, 2.0
  %v1867 = vmul.f32 %v1788, 2.0
  %v1868 = vmul.f32 %v1790, 2.0
  %v1869 = vmul.f32 %v1792, 2.0
  %v1870 = vmul.f32 %v1794, 2.0
  %v1871 = vmul.f32 %v1796, 2.0
  %v1872 = vmul.f32 %v1798, 2.0
  %v1873 = vmul.f32 %v1800, 2.0
  %v1874 = vmul.f32 %v1802, 2.0
  %v1875 = vmul.f32 %v1804, 2.0
  %v1876 = vmul.f32 %v1806, 2.0
  %v1877 = vmul.f32 %v1808, 2.0
  %v1878 = vmul.f32 %v1810, 2.0
  %v1879 = vmul.f32 %v1812, 2.0
  %v1880 = vmul.f32 %v1814, 2.0
  %v1881 = vmul.f32 %v1816, 2.0
  %v1882 = vmul.f32 %v1818, 2.0
  %v1883 = vsub.f32 %v1819, 1.0
  %v1884 = vsub.f32 %v1820, 1.0
  %v1885 = vsub.f32 %v1821, 1.0
  %v1886 = vsub.f32 %v1822, 1.0
  %v1887 = vsub.f32 %v1823, 1.0
  %v1888 = vsub.f32 %v1824, 1.0
  %v1889 = vsub.f32 %v1825, 1.0
  %v1890 = vsub.f32 %v1826, 1.0
  %v1891 = vsub.f32 %v1827, 1.0
  %v1892 = vsub.f32 %v1828, 1.0
  %v1893 = vsub.f32 %v1829, 1.0
  %v1894 = vsub.f32 %v1830, 1.0
  %v1895 = vsub.f32 %v1831, 1.0
  %v1896 = vsub.f32 %v1832, 1.0
  %v1897 = vsub.f32 %v1833, 1.0
  %v1898 = vsub.f32 %v1834, 1.0
  %v1899 = vsub.f32 %v1835, 1.0
  %v1900 = vsub.f32 %v1836, 1.0
  %v1901 = vsub.f32 %v1837, 1.0
  %v1902 = vsub.f32 %v1838, 1.0
  %v1903 = vsub.f32 %v1839, 1.0
  %v1904 = vsub.f32 %v1840, 1.0
  %v1905 = vsub.f32 %v1841, 1.0
  %v1906 = vsub.f32 %v1842, 1.0
  %v1907 = vsub.f32 %v1843, 1.0
  %v1908 = vsub.f32 %v1844, 1.0
  %v1909 = vsub.f32 %v1845, 1.0
  %v1910 = vsub.f32 %v1846, 1.0
  %v1911 = vsub.f32 %v1847, 1.0
  %v1912 = vsub.f32 %v1848, 1.0
  %v1913 = vsub.f32 %v1849, 1.0
  %v1914 = vsub.f32 %v1850, 1.0
  %v1915 = vsub.f32 %v1851, 1.0
  %v1916 = vsub.f32 %v1852, 1.0
  %v1917 = vsub.f32 %v1853, 1.0
  %v1918 = vsub.f32 %v1854, 1.0
  %v1919 = vsub.f32 %v1855, 1.0
  %v1920 = vsub.f32 %v1856, 1.0
  %v1921 = vsub.f32 %v1857, 1.0
  %v1922 = vsub.f32 %v1858, 1.0
  %v1923 = vsub.f32 %v1859, 1.0
  %v1924 = vsub.f32 %v1860, 1.0
  %v1925 = vsub.f32 %v1861, 1.0
  %v1926 = vsub.f32 %v1862, 1.0
  %v1927 = vsub.f32 %v1863, 1.0
  %v1928 = vsub.f32 %v1864, 1.0
  %v1929 = vsub.f32 %v1865, 1.0
  %v1930 = vsub.f32 %v1866, 1.0
  %v1931 = vsub.f32 %v1867, 1.0
  %v1932 = vsub.f32 %v1868, 1.0
  %v1933 = vsub.f32 %v1869, 1.0
  %v1934 = vsub.f32 %v1870, 1.0
  %v1935 = vsub.f32 %v1871, 1.0
  %v1936 = vsub.f32 %v1872, 1.0
  %v1937 = vsub.f32 %v1873, 1.0
  %v1938 = vsub.f32 %v1874, 1.0
  %v1939 = vsub.f32 %v1875, 1.0
  %v1940 = vsub.f32 %v1876, 1.0
  %v1941 = vsub.f32 %v1877, 1.0
  %v1942 = vsub.f32 %v1878, 1.0
  %v1943 = vsub.f32 %v1879, 1.0
  %v1944 = vsub.f32 %v1880, 1.0
  %v1945 = vsub.f32 %v1881, 1.0
  %v1946 = vsub.f32 %v1882, 1.0
  %v1947 = vld [vmem:[%s1] sm:$0xff]
  %v1948 = vld [vmem:[%s1 + $0x8] sm:$0xff]
  %v1949 = vld [vmem:[%s1 + $0x10] sm:$0xff]
  %v1950 = vld [vmem:[%s1 + $0x18] sm:$0xff]
  %v1951 = vld [vmem:[%s1 + $0x20] sm:$0xff]
  %v1952 = vld [vmem:[%s1 + $0x28] sm:$0xff]
  %v1953 = vld [vmem:[%s1 + $0x30] sm:$0xff]
  %v1954 = vld [vmem:[%s1 + $0x38] sm:$0xff]
  %v1955 = vld [vmem:[%s1 + $0x40] sm:$0xff]
  %v1956 = vld [vmem:[%s1 + $0x48] sm:$0xff]
  %v1957 = vld [vmem:[%s1 + $0x50] sm:$0xff]
  %v1958 = vld [vmem:[%s1 + $0x58] sm:$0xff]
  %v1959 = vld [vmem:[%s1 + $0x60] sm:$0xff]
  %v1960 = vld [vmem:[%s1 + $0x68] sm:$0xff]
  %v1961 = vld [vmem:[%s1 + $0x70] sm:$0xff]
  %v1962 = vld [vmem:[%s1 + $0x78] sm:$0xff]
  %v1963 = vld [vmem:[%s1 + $0x80] sm:$0xff]
  %v1964 = vld [vmem:[%s1 + $0x88] sm:$0xff]
  %v1965 = vld [vmem:[%s1 + $0x90] sm:$0xff]
  %v1966 = vld [vmem:[%s1 + $0x98] sm:$0xff]
  %v1967 = vld [vmem:[%s1 + $0xa0] sm:$0xff]
  %v1968 = vld [vmem:[%s1 + $0xa8] sm:$0xff]
  %v1969 = vld [vmem:[%s1 + $0xb0] sm:$0xff]
  %v1970 = vld [vmem:[%s1 + $0xb8] sm:$0xff]
  %v1971 = vld [vmem:[%s1 + $0xc0] sm:$0xff]
  %v1972 = vld [vmem:[%s1 + $0xc8] sm:$0xff]
  %v1973 = vld [vmem:[%s1 + $0xd0] sm:$0xff]
  %v1974 = vld [vmem:[%s1 + $0xd8] sm:$0xff]
  %v1975 = vld [vmem:[%s1 + $0xe0] sm:$0xff]
  %v1976 = vld [vmem:[%s1 + $0xe8] sm:$0xff]
  %v1977 = vld [vmem:[%s1 + $0xf0] sm:$0xff]
  %v1978 = vld [vmem:[%s1 + $0xf8] sm:$0xff]
  %v1979 = vld [vmem:[%s1 + $0x100] sm:$0xff]
  %v1980 = vld [vmem:[%s1 + $0x108] sm:$0xff]
  %v1981 = vld [vmem:[%s1 + $0x110] sm:$0xff]
  %v1982 = vld [vmem:[%s1 + $0x118] sm:$0xff]
  %v1983 = vld [vmem:[%s1 + $0x120] sm:$0xff]
  %v1984 = vld [vmem:[%s1 + $0x128] sm:$0xff]
  %v1985 = vld [vmem:[%s1 + $0x130] sm:$0xff]
  %v1986 = vld [vmem:[%s1 + $0x138] sm:$0xff]
  %v1987 = vld [vmem:[%s1 + $0x140] sm:$0xff]
  %v1988 = vld [vmem:[%s1 + $0x148] sm:$0xff]
  %v1989 = vld [vmem:[%s1 + $0x150] sm:$0xff]
  %v1990 = vld [vmem:[%s1 + $0x158] sm:$0xff]
  %v1991 = vld [vmem:[%s1 + $0x160] sm:$0xff]
  %v1992 = vld [vmem:[%s1 + $0x168] sm:$0xff]
  %v1993 = vld [vmem:[%s1 + $0x170] sm:$0xff]
  %v1994 = vld [vmem:[%s1 + $0x178] sm:$0xff]
  %v1995 = vld [vmem:[%s1 + $0x180] sm:$0xff]
  %v1996 = vld [vmem:[%s1 + $0x188] sm:$0xff]
  %v1997 = vld [vmem:[%s1 + $0x190] sm:$0xff]
  %v1998 = vld [vmem:[%s1 + $0x198] sm:$0xff]
  %v1999 = vld [vmem:[%s1 + $0x1a0] sm:$0xff]
  %v2000 = vld [vmem:[%s1 + $0x1a8] sm:$0xff]
  %v2001 = vld [vmem:[%s1 + $0x1b0] sm:$0xff]
  %v2002 = vld [vmem:[%s1 + $0x1b8] sm:$0xff]
  %v2003 = vld [vmem:[%s1 + $0x1c0] sm:$0xff]
  %v2004 = vld [vmem:[%s1 + $0x1c8] sm:$0xff]
  %v2005 = vld [vmem:[%s1 + $0x1d0] sm:$0xff]
  %v2006 = vld [vmem:[%s1 + $0x1d8] sm:$0xff]
  %v2007 = vld [vmem:[%s1 + $0x1e0] sm:$0xff]
  %v2008 = vld [vmem:[%s1 + $0x1e8] sm:$0xff]
  %v2009 = vld [vmem:[%s1 + $0x1f0] sm:$0xff]
  %v2010 = vld [vmem:[%s1 + $0x1f8] sm:$0xff]
  %2075 = vrot.lane.b32.xlu0 %v1947, 32
  %v2076 = vpop.permute.xlu0 %2075
  %2077 = vrot.lane.b32.xlu0 %v1948, 32
  %v2078 = vpop.permute.xlu0 %2077
  %2079 = vrot.lane.b32.xlu0 %v1949, 32
  %v2080 = vpop.permute.xlu0 %2079
  %2081 = vrot.lane.b32.xlu0 %v1950, 32
  %v2082 = vpop.permute.xlu0 %2081
  %2083 = vrot.lane.b32.xlu0 %v1951, 32
  %v2084 = vpop.permute.xlu0 %2083
  %2085 = vrot.lane.b32.xlu0 %v1952, 32
  %v2086 = vpop.permute.xlu0 %2085
  %2087 = vrot.lane.b32.xlu0 %v1953, 32
  %v2088 = vpop.permute.xlu0 %2087
  %2089 = vrot.lane.b32.xlu0 %v1954, 32
  %v2090 = vpop.permute.xlu0 %2089
  %2091 = vrot.lane.b32.xlu0 %v1955, 32
  %v2092 = vpop.permute.xlu0 %2091
  %2093 = vrot.lane.b32.xlu0 %v1956, 32
  %v2094 = vpop.permute.xlu0 %2093
  %2095 = vrot.lane.b32.xlu0 %v1957, 32
  %v2096 = vpop.permute.xlu0 %2095
  %2097 = vrot.lane.b32.xlu0 %v1958, 32
  %v2098 = vpop.permute.xlu0 %2097
  %2099 = vrot.lane.b32.xlu0 %v1959, 32
  %v2100 = vpop.permute.xlu0 %2099
  %2101 = vrot.lane.b32.xlu0 %v1960, 32
  %v2102 = vpop.permute.xlu0 %2101
  %2103 = vrot.lane.b32.xlu0 %v1961, 32
  %v2104 = vpop.permute.xlu0 %2103
  %2105 = vrot.lane.b32.xlu0 %v1962, 32
  %v2106 = vpop.permute.xlu0 %2105
  %2107 = vrot.lane.b32.xlu0 %v1963, 32
  %v2108 = vpop.permute.xlu0 %2107
  %2109 = vrot.lane.b32.xlu0 %v1964, 32
  %v2110 = vpop.permute.xlu0 %2109
  %2111 = vrot.lane.b32.xlu0 %v1965, 32
  %v2112 = vpop.permute.xlu0 %2111
  %2113 = vrot.lane.b32.xlu0 %v1966, 32
  %v2114 = vpop.permute.xlu0 %2113
  %2115 = vrot.lane.b32.xlu0 %v1967, 32
  %v2116 = vpop.permute.xlu0 %2115
  %2117 = vrot.lane.b32.xlu0 %v1968, 32
  %v2118 = vpop.permute.xlu0 %2117
  %2119 = vrot.lane.b32.xlu0 %v1969, 32
  %v2120 = vpop.permute.xlu0 %2119
  %2121 = vrot.lane.b32.xlu0 %v1970, 32
  %v2122 = vpop.permute.xlu0 %2121
  %2123 = vrot.lane.b32.xlu0 %v1971, 32
  %v2124 = vpop.permute.xlu0 %2123
  %2125 = vrot.lane.b32.xlu0 %v1972, 32
  %v2126 = vpop.permute.xlu0 %2125
  %2127 = vrot.lane.b32.xlu0 %v1973, 32
  %v2128 = vpop.permute.xlu0 %2127
  %2129 = vrot.lane.b32.xlu0 %v1974, 32
  %v2130 = vpop.permute.xlu0 %2129
  %2131 = vrot.lane.b32.xlu0 %v1975, 32
  %v2132 = vpop.permute.xlu0 %2131
  %2133 = vrot.lane.b32.xlu0 %v1976, 32
  %v2134 = vpop.permute.xlu0 %2133
  %2135 = vrot.lane.b32.xlu0 %v1977, 32
  %v2136 = vpop.permute.xlu0 %2135
  %2137 = vrot.lane.b32.xlu0 %v1978, 32
  %v2138 = vpop.permute.xlu0 %2137
  %2139 = vrot.lane.b32.xlu0 %v1979, 32
  %v2140 = vpop.permute.xlu0 %2139
  %2141 = vrot.lane.b32.xlu0 %v1980, 32
  %v2142 = vpop.permute.xlu0 %2141
  %2143 = vrot.lane.b32.xlu0 %v1981, 32
  %v2144 = vpop.permute.xlu0 %2143
  %2145 = vrot.lane.b32.xlu0 %v1982, 32
  %v2146 = vpop.permute.xlu0 %2145
  %2147 = vrot.lane.b32.xlu0 %v1983, 32
  %v2148 = vpop.permute.xlu0 %2147
  %2149 = vrot.lane.b32.xlu0 %v1984, 32
  %v2150 = vpop.permute.xlu0 %2149
  %2151 = vrot.lane.b32.xlu0 %v1985, 32
  %v2152 = vpop.permute.xlu0 %2151
  %2153 = vrot.lane.b32.xlu0 %v1986, 32
  %v2154 = vpop.permute.xlu0 %2153
  %2155 = vrot.lane.b32.xlu0 %v1987, 32
  %v2156 = vpop.permute.xlu0 %2155
  %2157 = vrot.lane.b32.xlu0 %v1988, 32
  %v2158 = vpop.permute.xlu0 %2157
  %2159 = vrot.lane.b32.xlu0 %v1989, 32
  %v2160 = vpop.permute.xlu0 %2159
  %2161 = vrot.lane.b32.xlu0 %v1990, 32
  %v2162 = vpop.permute.xlu0 %2161
  %2163 = vrot.lane.b32.xlu0 %v1991, 32
  %v2164 = vpop.permute.xlu0 %2163
  %2165 = vrot.lane.b32.xlu0 %v1992, 32
  %v2166 = vpop.permute.xlu0 %2165
  %2167 = vrot.lane.b32.xlu0 %v1993, 32
  %v2168 = vpop.permute.xlu0 %2167
  %2169 = vrot.lane.b32.xlu0 %v1994, 32
  %v2170 = vpop.permute.xlu0 %2169
  %2171 = vrot.lane.b32.xlu0 %v1995, 32
  %v2172 = vpop.permute.xlu0 %2171
  %2173 = vrot.lane.b32.xlu0 %v1996, 32
  %v2174 = vpop.permute.xlu0 %2173
  %2175 = vrot.lane.b32.xlu0 %v1997, 32
  %v2176 = vpop.permute.xlu0 %2175
  %2177 = vrot.lane.b32.xlu0 %v1998, 32
  %v2178 = vpop.permute.xlu0 %2177
  %2179 = vrot.lane.b32.xlu0 %v1999, 32
  %v2180 = vpop.permute.xlu0 %2179
  %2181 = vrot.lane.b32.xlu0 %v2000, 32
  %v2182 = vpop.permute.xlu0 %2181
  %2183 = vrot.lane.b32.xlu0 %v2001, 32
  %v2184 = vpop.permute.xlu0 %2183
  %2185 = vrot.lane.b32.xlu0 %v2002, 32
  %v2186 = vpop.permute.xlu0 %2185
  %2187 = vrot.lane.b32.xlu0 %v2003, 32
  %v2188 = vpop.permute.xlu0 %2187
  %2189 = vrot.lane.b32.xlu0 %v2004, 32
  %v2190 = vpop.permute.xlu0 %2189
  %2191 = vrot.lane.b32.xlu0 %v2005, 32
  %v2192 = vpop.permute.xlu0 %2191
  %2193 = vrot.lane.b32.xlu0 %v2006, 32
  %v2194 = vpop.permute.xlu0 %2193
  %2195 = vrot.lane.b32.xlu0 %v2007, 32
  %v2196 = vpop.permute.xlu0 %2195
  %2197 = vrot.lane.b32.xlu0 %v2008, 32
  %v2198 = vpop.permute.xlu0 %2197
  %2199 = vrot.lane.b32.xlu0 %v2009, 32
  %v2200 = vpop.permute.xlu0 %2199
  %2201 = vrot.lane.b32.xlu0 %v2010, 32
  %v2202 = vpop.permute.xlu0 %2201
  %v2267 = vmul.f32 %v1692, %v2076
  %v2268 = vmul.f32 %v1694, %v2078
  %v2269 = vmul.f32 %v1696, %v2080
  %v2270 = vmul.f32 %v1698, %v2082
  %v2271 = vmul.f32 %v1700, %v2084
  %v2272 = vmul.f32 %v1702, %v2086
  %v2273 = vmul.f32 %v1704, %v2088
  %v2274 = vmul.f32 %v1706, %v2090
  %v2275 = vmul.f32 %v1708, %v2092
  %v2276 = vmul.f32 %v1710, %v2094
  %v2277 = vmul.f32 %v1712, %v2096
  %v2278 = vmul.f32 %v1714, %v2098
  %v2279 = vmul.f32 %v1716, %v2100
  %v2280 = vmul.f32 %v1718, %v2102
  %v2281 = vmul.f32 %v1720, %v2104
  %v2282 = vmul.f32 %v1722, %v2106
  %v2283 = vmul.f32 %v1724, %v2108
  %v2284 = vmul.f32 %v1726, %v2110
  %v2285 = vmul.f32 %v1728, %v2112
  %v2286 = vmul.f32 %v1730, %v2114
  %v2287 = vmul.f32 %v1732, %v2116
  %v2288 = vmul.f32 %v1734, %v2118
  %v2289 = vmul.f32 %v1736, %v2120
  %v2290 = vmul.f32 %v1738, %v2122
  %v2291 = vmul.f32 %v1740, %v2124
  %v2292 = vmul.f32 %v1742, %v2126
  %v2293 = vmul.f32 %v1744, %v2128
  %v2294 = vmul.f32 %v1746, %v2130
  %v2295 = vmul.f32 %v1748, %v2132
  %v2296 = vmul.f32 %v1750, %v2134
  %v2297 = vmul.f32 %v1752, %v2136
  %v2298 = vmul.f32 %v1754, %v2138
  %v2299 = vmul.f32 %v1756, %v2140
  %v2300 = vmul.f32 %v1758, %v2142
  %v2301 = vmul.f32 %v1760, %v2144
  %v2302 = vmul.f32 %v1762, %v2146
  %v2303 = vmul.f32 %v1764, %v2148
  %v2304 = vmul.f32 %v1766, %v2150
  %v2305 = vmul.f32 %v1768, %v2152
  %v2306 = vmul.f32 %v1770, %v2154
  %v2307 = vmul.f32 %v1772, %v2156
  %v2308 = vmul.f32 %v1774, %v2158
  %v2309 = vmul.f32 %v1776, %v2160
  %v2310 = vmul.f32 %v1778, %v2162
  %v2311 = vmul.f32 %v1780, %v2164
  %v2312 = vmul.f32 %v1782, %v2166
  %v2313 = vmul.f32 %v1784, %v2168
  %v2314 = vmul.f32 %v1786, %v2170
  %v2315 = vmul.f32 %v1788, %v2172
  %v2316 = vmul.f32 %v1790, %v2174
  %v2317 = vmul.f32 %v1792, %v2176
  %v2318 = vmul.f32 %v1794, %v2178
  %v2319 = vmul.f32 %v1796, %v2180
  %v2320 = vmul.f32 %v1798, %v2182
  %v2321 = vmul.f32 %v1800, %v2184
  %v2322 = vmul.f32 %v1802, %v2186
  %v2323 = vmul.f32 %v1804, %v2188
  %v2324 = vmul.f32 %v1806, %v2190
  %v2325 = vmul.f32 %v1808, %v2192
  %v2326 = vmul.f32 %v1810, %v2194
  %v2327 = vmul.f32 %v1812, %v2196
  %v2328 = vmul.f32 %v1814, %v2198
  %v2329 = vmul.f32 %v1816, %v2200
  %v2330 = vmul.f32 %v1818, %v2202
  %2395 = vrot.lane.b32.xlu0 %v1883, 32
  %v2396 = vpop.permute.xlu0 %2395
  %2397 = vrot.lane.b32.xlu0 %v1884, 32
  %v2398 = vpop.permute.xlu0 %2397
  %2399 = vrot.lane.b32.xlu0 %v1885, 32
  %v2400 = vpop.permute.xlu0 %2399
  %2401 = vrot.lane.b32.xlu0 %v1886, 32
  %v2402 = vpop.permute.xlu0 %2401
  %2403 = vrot.lane.b32.xlu0 %v1887, 32
  %v2404 = vpop.permute.xlu0 %2403
  %2405 = vrot.lane.b32.xlu0 %v1888, 32
  %v2406 = vpop.permute.xlu0 %2405
  %2407 = vrot.lane.b32.xlu0 %v1889, 32
  %v2408 = vpop.permute.xlu0 %2407
  %2409 = vrot.lane.b32.xlu0 %v1890, 32
  %v2410 = vpop.permute.xlu0 %2409
  %2411 = vrot.lane.b32.xlu0 %v1891, 32
  %v2412 = vpop.permute.xlu0 %2411
  %2413 = vrot.lane.b32.xlu0 %v1892, 32
  %v2414 = vpop.permute.xlu0 %2413
  %2415 = vrot.lane.b32.xlu0 %v1893, 32
  %v2416 = vpop.permute.xlu0 %2415
  %2417 = vrot.lane.b32.xlu0 %v1894, 32
  %v2418 = vpop.permute.xlu0 %2417
  %2419 = vrot.lane.b32.xlu0 %v1895, 32
  %v2420 = vpop.permute.xlu0 %2419
  %2421 = vrot.lane.b32.xlu0 %v1896, 32
  %v2422 = vpop.permute.xlu0 %2421
  %2423 = vrot.lane.b32.xlu0 %v1897, 32
  %v2424 = vpop.permute.xlu0 %2423
  %2425 = vrot.lane.b32.xlu0 %v1898, 32
  %v2426 = vpop.permute.xlu0 %2425
  %2427 = vrot.lane.b32.xlu0 %v1899, 32
  %v2428 = vpop.permute.xlu0 %2427
  %2429 = vrot.lane.b32.xlu0 %v1900, 32
  %v2430 = vpop.permute.xlu0 %2429
  %2431 = vrot.lane.b32.xlu0 %v1901, 32
  %v2432 = vpop.permute.xlu0 %2431
  %2433 = vrot.lane.b32.xlu0 %v1902, 32
  %v2434 = vpop.permute.xlu0 %2433
  %2435 = vrot.lane.b32.xlu0 %v1903, 32
  %v2436 = vpop.permute.xlu0 %2435
  %2437 = vrot.lane.b32.xlu0 %v1904, 32
  %v2438 = vpop.permute.xlu0 %2437
  %2439 = vrot.lane.b32.xlu0 %v1905, 32
  %v2440 = vpop.permute.xlu0 %2439
  %2441 = vrot.lane.b32.xlu0 %v1906, 32
  %v2442 = vpop.permute.xlu0 %2441
  %2443 = vrot.lane.b32.xlu0 %v1907, 32
  %v2444 = vpop.permute.xlu0 %2443
  %2445 = vrot.lane.b32.xlu0 %v1908, 32
  %v2446 = vpop.permute.xlu0 %2445
  %2447 = vrot.lane.b32.xlu0 %v1909, 32
  %v2448 = vpop.permute.xlu0 %2447
  %2449 = vrot.lane.b32.xlu0 %v1910, 32
  %v2450 = vpop.permute.xlu0 %2449
  %2451 = vrot.lane.b32.xlu0 %v1911, 32
  %v2452 = vpop.permute.xlu0 %2451
  %2453 = vrot.lane.b32.xlu0 %v1912, 32
  %v2454 = vpop.permute.xlu0 %2453
  %2455 = vrot.lane.b32.xlu0 %v1913, 32
  %v2456 = vpop.permute.xlu0 %2455
  %2457 = vrot.lane.b32.xlu0 %v1914, 32
  %v2458 = vpop.permute.xlu0 %2457
  %2459 = vrot.lane.b32.xlu0 %v1915, 32
  %v2460 = vpop.permute.xlu0 %2459
  %2461 = vrot.lane.b32.xlu0 %v1916, 32
  %v2462 = vpop.permute.xlu0 %2461
  %2463 = vrot.lane.b32.xlu0 %v1917, 32
  %v2464 = vpop.permute.xlu0 %2463
  %2465 = vrot.lane.b32.xlu0 %v1918, 32
  %v2466 = vpop.permute.xlu0 %2465
  %2467 = vrot.lane.b32.xlu0 %v1919, 32
  %v2468 = vpop.permute.xlu0 %2467
  %2469 = vrot.lane.b32.xlu0 %v1920, 32
  %v2470 = vpop.permute.xlu0 %2469
  %2471 = vrot.lane.b32.xlu0 %v1921, 32
  %v2472 = vpop.permute.xlu0 %2471
  %2473 = vrot.lane.b32.xlu0 %v1922, 32
  %v2474 = vpop.permute.xlu0 %2473
  %2475 = vrot.lane.b32.xlu0 %v1923, 32
  %v2476 = vpop.permute.xlu0 %2475
  %2477 = vrot.lane.b32.xlu0 %v1924, 32
  %v2478 = vpop.permute.xlu0 %2477
  %2479 = vrot.lane.b32.xlu0 %v1925, 32
  %v2480 = vpop.permute.xlu0 %2479
  %2481 = vrot.lane.b32.xlu0 %v1926, 32
  %v2482 = vpop.permute.xlu0 %2481
  %2483 = vrot.lane.b32.xlu0 %v1927, 32
  %v2484 = vpop.permute.xlu0 %2483
  %2485 = vrot.lane.b32.xlu0 %v1928, 32
  %v2486 = vpop.permute.xlu0 %2485
  %2487 = vrot.lane.b32.xlu0 %v1929, 32
  %v2488 = vpop.permute.xlu0 %2487
  %2489 = vrot.lane.b32.xlu0 %v1930, 32
  %v2490 = vpop.permute.xlu0 %2489
  %2491 = vrot.lane.b32.xlu0 %v1931, 32
  %v2492 = vpop.permute.xlu0 %2491
  %2493 = vrot.lane.b32.xlu0 %v1932, 32
  %v2494 = vpop.permute.xlu0 %2493
  %2495 = vrot.lane.b32.xlu0 %v1933, 32
  %v2496 = vpop.permute.xlu0 %2495
  %2497 = vrot.lane.b32.xlu0 %v1934, 32
  %v2498 = vpop.permute.xlu0 %2497
  %2499 = vrot.lane.b32.xlu0 %v1935, 32
  %v2500 = vpop.permute.xlu0 %2499
  %2501 = vrot.lane.b32.xlu0 %v1936, 32
  %v2502 = vpop.permute.xlu0 %2501
  %2503 = vrot.lane.b32.xlu0 %v1937, 32
  %v2504 = vpop.permute.xlu0 %2503
  %2505 = vrot.lane.b32.xlu0 %v1938, 32
  %v2506 = vpop.permute.xlu0 %2505
  %2507 = vrot.lane.b32.xlu0 %v1939, 32
  %v2508 = vpop.permute.xlu0 %2507
  %2509 = vrot.lane.b32.xlu0 %v1940, 32
  %v2510 = vpop.permute.xlu0 %2509
  %2511 = vrot.lane.b32.xlu0 %v1941, 32
  %v2512 = vpop.permute.xlu0 %2511
  %2513 = vrot.lane.b32.xlu0 %v1942, 32
  %v2514 = vpop.permute.xlu0 %2513
  %2515 = vrot.lane.b32.xlu0 %v1943, 32
  %v2516 = vpop.permute.xlu0 %2515
  %2517 = vrot.lane.b32.xlu0 %v1944, 32
  %v2518 = vpop.permute.xlu0 %2517
  %2519 = vrot.lane.b32.xlu0 %v1945, 32
  %v2520 = vpop.permute.xlu0 %2519
  %2521 = vrot.lane.b32.xlu0 %v1946, 32
  %v2522 = vpop.permute.xlu0 %2521
  %v2587 = vmul.f32 %v1692, %v2396
  %v2588 = vmul.f32 %v1694, %v2398
  %v2589 = vmul.f32 %v1696, %v2400
  %v2590 = vmul.f32 %v1698, %v2402
  %v2591 = vmul.f32 %v1700, %v2404
  %v2592 = vmul.f32 %v1702, %v2406
  %v2593 = vmul.f32 %v1704, %v2408
  %v2594 = vmul.f32 %v1706, %v2410
  %v2595 = vmul.f32 %v1708, %v2412
  %v2596 = vmul.f32 %v1710, %v2414
  %v2597 = vmul.f32 %v1712, %v2416
  %v2598 = vmul.f32 %v1714, %v2418
  %v2599 = vmul.f32 %v1716, %v2420
  %v2600 = vmul.f32 %v1718, %v2422
  %v2601 = vmul.f32 %v1720, %v2424
  %v2602 = vmul.f32 %v1722, %v2426
  %v2603 = vmul.f32 %v1724, %v2428
  %v2604 = vmul.f32 %v1726, %v2430
  %v2605 = vmul.f32 %v1728, %v2432
  %v2606 = vmul.f32 %v1730, %v2434
  %v2607 = vmul.f32 %v1732, %v2436
  %v2608 = vmul.f32 %v1734, %v2438
  %v2609 = vmul.f32 %v1736, %v2440
  %v2610 = vmul.f32 %v1738, %v2442
  %v2611 = vmul.f32 %v1740, %v2444
  %v2612 = vmul.f32 %v1742, %v2446
  %v2613 = vmul.f32 %v1744, %v2448
  %v2614 = vmul.f32 %v1746, %v2450
  %v2615 = vmul.f32 %v1748, %v2452
  %v2616 = vmul.f32 %v1750, %v2454
  %v2617 = vmul.f32 %v1752, %v2456
  %v2618 = vmul.f32 %v1754, %v2458
  %v2619 = vmul.f32 %v1756, %v2460
  %v2620 = vmul.f32 %v1758, %v2462
  %v2621 = vmul.f32 %v1760, %v2464
  %v2622 = vmul.f32 %v1762, %v2466
  %v2623 = vmul.f32 %v1764, %v2468
  %v2624 = vmul.f32 %v1766, %v2470
  %v2625 = vmul.f32 %v1768, %v2472
  %v2626 = vmul.f32 %v1770, %v2474
  %v2627 = vmul.f32 %v1772, %v2476
  %v2628 = vmul.f32 %v1774, %v2478
  %v2629 = vmul.f32 %v1776, %v2480
  %v2630 = vmul.f32 %v1778, %v2482
  %v2631 = vmul.f32 %v1780, %v2484
  %v2632 = vmul.f32 %v1782, %v2486
  %v2633 = vmul.f32 %v1784, %v2488
  %v2634 = vmul.f32 %v1786, %v2490
  %v2635 = vmul.f32 %v1788, %v2492
  %v2636 = vmul.f32 %v1790, %v2494
  %v2637 = vmul.f32 %v1792, %v2496
  %v2638 = vmul.f32 %v1794, %v2498
  %v2639 = vmul.f32 %v1796, %v2500
  %v2640 = vmul.f32 %v1798, %v2502
  %v2641 = vmul.f32 %v1800, %v2504
  %v2642 = vmul.f32 %v1802, %v2506
  %v2643 = vmul.f32 %v1804, %v2508
  %v2644 = vmul.f32 %v1806, %v2510
  %v2645 = vmul.f32 %v1808, %v2512
  %v2646 = vmul.f32 %v1810, %v2514
  %v2647 = vmul.f32 %v1812, %v2516
  %v2648 = vmul.f32 %v1814, %v2518
  %v2649 = vmul.f32 %v1816, %v2520
  %v2650 = vmul.f32 %v1818, %v2522
  %2715 = vrot.lane.b32.xlu0 %v2587, 32
  %v2716 = vpop.permute.xlu0 %2715
  %2717 = vrot.lane.b32.xlu0 %v2588, 32
  %v2718 = vpop.permute.xlu0 %2717
  %2719 = vrot.lane.b32.xlu0 %v2589, 32
  %v2720 = vpop.permute.xlu0 %2719
  %2721 = vrot.lane.b32.xlu0 %v2590, 32
  %v2722 = vpop.permute.xlu0 %2721
  %2723 = vrot.lane.b32.xlu0 %v2591, 32
  %v2724 = vpop.permute.xlu0 %2723
  %2725 = vrot.lane.b32.xlu0 %v2592, 32
  %v2726 = vpop.permute.xlu0 %2725
  %2727 = vrot.lane.b32.xlu0 %v2593, 32
  %v2728 = vpop.permute.xlu0 %2727
  %2729 = vrot.lane.b32.xlu0 %v2594, 32
  %v2730 = vpop.permute.xlu0 %2729
  %2731 = vrot.lane.b32.xlu0 %v2595, 32
  %v2732 = vpop.permute.xlu0 %2731
  %2733 = vrot.lane.b32.xlu0 %v2596, 32
  %v2734 = vpop.permute.xlu0 %2733
  %2735 = vrot.lane.b32.xlu0 %v2597, 32
  %v2736 = vpop.permute.xlu0 %2735
  %2737 = vrot.lane.b32.xlu0 %v2598, 32
  %v2738 = vpop.permute.xlu0 %2737
  %2739 = vrot.lane.b32.xlu0 %v2599, 32
  %v2740 = vpop.permute.xlu0 %2739
  %2741 = vrot.lane.b32.xlu0 %v2600, 32
  %v2742 = vpop.permute.xlu0 %2741
  %2743 = vrot.lane.b32.xlu0 %v2601, 32
  %v2744 = vpop.permute.xlu0 %2743
  %2745 = vrot.lane.b32.xlu0 %v2602, 32
  %v2746 = vpop.permute.xlu0 %2745
  %2747 = vrot.lane.b32.xlu0 %v2603, 32
  %v2748 = vpop.permute.xlu0 %2747
  %2749 = vrot.lane.b32.xlu0 %v2604, 32
  %v2750 = vpop.permute.xlu0 %2749
  %2751 = vrot.lane.b32.xlu0 %v2605, 32
  %v2752 = vpop.permute.xlu0 %2751
  %2753 = vrot.lane.b32.xlu0 %v2606, 32
  %v2754 = vpop.permute.xlu0 %2753
  %2755 = vrot.lane.b32.xlu0 %v2607, 32
  %v2756 = vpop.permute.xlu0 %2755
  %2757 = vrot.lane.b32.xlu0 %v2608, 32
  %v2758 = vpop.permute.xlu0 %2757
  %2759 = vrot.lane.b32.xlu0 %v2609, 32
  %v2760 = vpop.permute.xlu0 %2759
  %2761 = vrot.lane.b32.xlu0 %v2610, 32
  %v2762 = vpop.permute.xlu0 %2761
  %2763 = vrot.lane.b32.xlu0 %v2611, 32
  %v2764 = vpop.permute.xlu0 %2763
  %2765 = vrot.lane.b32.xlu0 %v2612, 32
  %v2766 = vpop.permute.xlu0 %2765
  %2767 = vrot.lane.b32.xlu0 %v2613, 32
  %v2768 = vpop.permute.xlu0 %2767
  %2769 = vrot.lane.b32.xlu0 %v2614, 32
  %v2770 = vpop.permute.xlu0 %2769
  %2771 = vrot.lane.b32.xlu0 %v2615, 32
  %v2772 = vpop.permute.xlu0 %2771
  %2773 = vrot.lane.b32.xlu0 %v2616, 32
  %v2774 = vpop.permute.xlu0 %2773
  %2775 = vrot.lane.b32.xlu0 %v2617, 32
  %v2776 = vpop.permute.xlu0 %2775
  %2777 = vrot.lane.b32.xlu0 %v2618, 32
  %v2778 = vpop.permute.xlu0 %2777
  %2779 = vrot.lane.b32.xlu0 %v2619, 32
  %v2780 = vpop.permute.xlu0 %2779
  %2781 = vrot.lane.b32.xlu0 %v2620, 32
  %v2782 = vpop.permute.xlu0 %2781
  %2783 = vrot.lane.b32.xlu0 %v2621, 32
  %v2784 = vpop.permute.xlu0 %2783
  %2785 = vrot.lane.b32.xlu0 %v2622, 32
  %v2786 = vpop.permute.xlu0 %2785
  %2787 = vrot.lane.b32.xlu0 %v2623, 32
  %v2788 = vpop.permute.xlu0 %2787
  %2789 = vrot.lane.b32.xlu0 %v2624, 32
  %v2790 = vpop.permute.xlu0 %2789
  %2791 = vrot.lane.b32.xlu0 %v2625, 32
  %v2792 = vpop.permute.xlu0 %2791
  %2793 = vrot.lane.b32.xlu0 %v2626, 32
  %v2794 = vpop.permute.xlu0 %2793
  %2795 = vrot.lane.b32.xlu0 %v2627, 32
  %v2796 = vpop.permute.xlu0 %2795
  %2797 = vrot.lane.b32.xlu0 %v2628, 32
  %v2798 = vpop.permute.xlu0 %2797
  %2799 = vrot.lane.b32.xlu0 %v2629, 32
  %v2800 = vpop.permute.xlu0 %2799
  %2801 = vrot.lane.b32.xlu0 %v2630, 32
  %v2802 = vpop.permute.xlu0 %2801
  %2803 = vrot.lane.b32.xlu0 %v2631, 32
  %v2804 = vpop.permute.xlu0 %2803
  %2805 = vrot.lane.b32.xlu0 %v2632, 32
  %v2806 = vpop.permute.xlu0 %2805
  %2807 = vrot.lane.b32.xlu0 %v2633, 32
  %v2808 = vpop.permute.xlu0 %2807
  %2809 = vrot.lane.b32.xlu0 %v2634, 32
  %v2810 = vpop.permute.xlu0 %2809
  %2811 = vrot.lane.b32.xlu0 %v2635, 32
  %v2812 = vpop.permute.xlu0 %2811
  %2813 = vrot.lane.b32.xlu0 %v2636, 32
  %v2814 = vpop.permute.xlu0 %2813
  %2815 = vrot.lane.b32.xlu0 %v2637, 32
  %v2816 = vpop.permute.xlu0 %2815
  %2817 = vrot.lane.b32.xlu0 %v2638, 32
  %v2818 = vpop.permute.xlu0 %2817
  %2819 = vrot.lane.b32.xlu0 %v2639, 32
  %v2820 = vpop.permute.xlu0 %2819
  %2821 = vrot.lane.b32.xlu0 %v2640, 32
  %v2822 = vpop.permute.xlu0 %2821
  %2823 = vrot.lane.b32.xlu0 %v2641, 32
  %v2824 = vpop.permute.xlu0 %2823
  %2825 = vrot.lane.b32.xlu0 %v2642, 32
  %v2826 = vpop.permute.xlu0 %2825
  %2827 = vrot.lane.b32.xlu0 %v2643, 32
  %v2828 = vpop.permute.xlu0 %2827
  %2829 = vrot.lane.b32.xlu0 %v2644, 32
  %v2830 = vpop.permute.xlu0 %2829
  %2831 = vrot.lane.b32.xlu0 %v2645, 32
  %v2832 = vpop.permute.xlu0 %2831
  %2833 = vrot.lane.b32.xlu0 %v2646, 32
  %v2834 = vpop.permute.xlu0 %2833
  %2835 = vrot.lane.b32.xlu0 %v2647, 32
  %v2836 = vpop.permute.xlu0 %2835
  %2837 = vrot.lane.b32.xlu0 %v2648, 32
  %v2838 = vpop.permute.xlu0 %2837
  %2839 = vrot.lane.b32.xlu0 %v2649, 32
  %v2840 = vpop.permute.xlu0 %2839
  %2841 = vrot.lane.b32.xlu0 %v2650, 32
  %v2842 = vpop.permute.xlu0 %2841
  %v2907 = vadd.f32 %v2267, %v2716
  %v2908 = vadd.f32 %v2268, %v2718
  %v2909 = vadd.f32 %v2269, %v2720
  %v2910 = vadd.f32 %v2270, %v2722
  %v2911 = vadd.f32 %v2271, %v2724
  %v2912 = vadd.f32 %v2272, %v2726
  %v2913 = vadd.f32 %v2273, %v2728
  %v2914 = vadd.f32 %v2274, %v2730
  %v2915 = vadd.f32 %v2275, %v2732
  %v2916 = vadd.f32 %v2276, %v2734
  %v2917 = vadd.f32 %v2277, %v2736
  %v2918 = vadd.f32 %v2278, %v2738
  %v2919 = vadd.f32 %v2279, %v2740
  %v2920 = vadd.f32 %v2280, %v2742
  %v2921 = vadd.f32 %v2281, %v2744
  %v2922 = vadd.f32 %v2282, %v2746
  %v2923 = vadd.f32 %v2283, %v2748
  %v2924 = vadd.f32 %v2284, %v2750
  %v2925 = vadd.f32 %v2285, %v2752
  %v2926 = vadd.f32 %v2286, %v2754
  %v2927 = vadd.f32 %v2287, %v2756
  %v2928 = vadd.f32 %v2288, %v2758
  %v2929 = vadd.f32 %v2289, %v2760
  %v2930 = vadd.f32 %v2290, %v2762
  %v2931 = vadd.f32 %v2291, %v2764
  %v2932 = vadd.f32 %v2292, %v2766
  %v2933 = vadd.f32 %v2293, %v2768
  %v2934 = vadd.f32 %v2294, %v2770
  %v2935 = vadd.f32 %v2295, %v2772
  %v2936 = vadd.f32 %v2296, %v2774
  %v2937 = vadd.f32 %v2297, %v2776
  %v2938 = vadd.f32 %v2298, %v2778
  %v2939 = vadd.f32 %v2299, %v2780
  %v2940 = vadd.f32 %v2300, %v2782
  %v2941 = vadd.f32 %v2301, %v2784
  %v2942 = vadd.f32 %v2302, %v2786
  %v2943 = vadd.f32 %v2303, %v2788
  %v2944 = vadd.f32 %v2304, %v2790
  %v2945 = vadd.f32 %v2305, %v2792
  %v2946 = vadd.f32 %v2306, %v2794
  %v2947 = vadd.f32 %v2307, %v2796
  %v2948 = vadd.f32 %v2308, %v2798
  %v2949 = vadd.f32 %v2309, %v2800
  %v2950 = vadd.f32 %v2310, %v2802
  %v2951 = vadd.f32 %v2311, %v2804
  %v2952 = vadd.f32 %v2312, %v2806
  %v2953 = vadd.f32 %v2313, %v2808
  %v2954 = vadd.f32 %v2314, %v2810
  %v2955 = vadd.f32 %v2315, %v2812
  %v2956 = vadd.f32 %v2316, %v2814
  %v2957 = vadd.f32 %v2317, %v2816
  %v2958 = vadd.f32 %v2318, %v2818
  %v2959 = vadd.f32 %v2319, %v2820
  %v2960 = vadd.f32 %v2320, %v2822
  %v2961 = vadd.f32 %v2321, %v2824
  %v2962 = vadd.f32 %v2322, %v2826
  %v2963 = vadd.f32 %v2323, %v2828
  %v2964 = vadd.f32 %v2324, %v2830
  %v2965 = vadd.f32 %v2325, %v2832
  %v2966 = vadd.f32 %v2326, %v2834
  %v2967 = vadd.f32 %v2327, %v2836
  %v2968 = vadd.f32 %v2328, %v2838
  %v2969 = vadd.f32 %v2329, %v2840
  %v2970 = vadd.f32 %v2330, %v2842
  %v2971 = vtanh.pop %v2907
  %v2972 = vtanh.pop %v2908
  %v2973 = vtanh.pop %v2909
  %v2974 = vtanh.pop %v2910
  %v2975 = vtanh.pop %v2911
  %v2976 = vtanh.pop %v2912
  %v2977 = vtanh.pop %v2913
  %v2978 = vtanh.pop %v2914
  %v2979 = vtanh.pop %v2915
  %v2980 = vtanh.pop %v2916
  %v2981 = vtanh.pop %v2917
  %v2982 = vtanh.pop %v2918
  %v2983 = vtanh.pop %v2919
  %v2984 = vtanh.pop %v2920
  %v2985 = vtanh.pop %v2921
  %v2986 = vtanh.pop %v2922
  %v2987 = vtanh.pop %v2923
  %v2988 = vtanh.pop %v2924
  %v2989 = vtanh.pop %v2925
  %v2990 = vtanh.pop %v2926
  %v2991 = vtanh.pop %v2927
  %v2992 = vtanh.pop %v2928
  %v2993 = vtanh.pop %v2929
  %v2994 = vtanh.pop %v2930
  %v2995 = vtanh.pop %v2931
  %v2996 = vtanh.pop %v2932
  %v2997 = vtanh.pop %v2933
  %v2998 = vtanh.pop %v2934
  %v2999 = vtanh.pop %v2935
  %v3000 = vtanh.pop %v2936
  %v3001 = vtanh.pop %v2937
  %v3002 = vtanh.pop %v2938
  %v3003 = vtanh.pop %v2939
  %v3004 = vtanh.pop %v2940
  %v3005 = vtanh.pop %v2941
  %v3006 = vtanh.pop %v2942
  %v3007 = vtanh.pop %v2943
  %v3008 = vtanh.pop %v2944
  %v3009 = vtanh.pop %v2945
  %v3010 = vtanh.pop %v2946
  %v3011 = vtanh.pop %v2947
  %v3012 = vtanh.pop %v2948
  %v3013 = vtanh.pop %v2949
  %v3014 = vtanh.pop %v2950
  %v3015 = vtanh.pop %v2951
  %v3016 = vtanh.pop %v2952
  %v3017 = vtanh.pop %v2953
  %v3018 = vtanh.pop %v2954
  %v3019 = vtanh.pop %v2955
  %v3020 = vtanh.pop %v2956
  %v3021 = vtanh.pop %v2957
  %v3022 = vtanh.pop %v2958
  %v3023 = vtanh.pop %v2959
  %v3024 = vtanh.pop %v2960
  %v3025 = vtanh.pop %v2961
  %v3026 = vtanh.pop %v2962
  %v3027 = vtanh.pop %v2963
  %v3028 = vtanh.pop %v2964
  %v3029 = vtanh.pop %v2965
  %v3030 = vtanh.pop %v2966
  %v3031 = vtanh.pop %v2967
  %v3032 = vtanh.pop %v2968
  %v3033 = vtanh.pop %v2969
  %v3034 = vtanh.pop %v2970
  %3099 = vrot.lane.b32.xlu0 %v2971, 32
  %v3100 = vpop.permute.xlu0 %3099
  %3101 = vrot.lane.b32.xlu0 %v2972, 32
  %v3102 = vpop.permute.xlu0 %3101
  %3103 = vrot.lane.b32.xlu0 %v2973, 32
  %v3104 = vpop.permute.xlu0 %3103
  %3105 = vrot.lane.b32.xlu0 %v2974, 32
  %v3106 = vpop.permute.xlu0 %3105
  %3107 = vrot.lane.b32.xlu0 %v2975, 32
  %v3108 = vpop.permute.xlu0 %3107
  %3109 = vrot.lane.b32.xlu0 %v2976, 32
  %v3110 = vpop.permute.xlu0 %3109
  %3111 = vrot.lane.b32.xlu0 %v2977, 32
  %v3112 = vpop.permute.xlu0 %3111
  %3113 = vrot.lane.b32.xlu0 %v2978, 32
  %v3114 = vpop.permute.xlu0 %3113
  %3115 = vrot.lane.b32.xlu0 %v2979, 32
  %v3116 = vpop.permute.xlu0 %3115
  %3117 = vrot.lane.b32.xlu0 %v2980, 32
  %v3118 = vpop.permute.xlu0 %3117
  %3119 = vrot.lane.b32.xlu0 %v2981, 32
  %v3120 = vpop.permute.xlu0 %3119
  %3121 = vrot.lane.b32.xlu0 %v2982, 32
  %v3122 = vpop.permute.xlu0 %3121
  %3123 = vrot.lane.b32.xlu0 %v2983, 32
  %v3124 = vpop.permute.xlu0 %3123
  %3125 = vrot.lane.b32.xlu0 %v2984, 32
  %v3126 = vpop.permute.xlu0 %3125
  %3127 = vrot.lane.b32.xlu0 %v2985, 32
  %v3128 = vpop.permute.xlu0 %3127
  %3129 = vrot.lane.b32.xlu0 %v2986, 32
  %v3130 = vpop.permute.xlu0 %3129
  %3131 = vrot.lane.b32.xlu0 %v2987, 32
  %v3132 = vpop.permute.xlu0 %3131
  %3133 = vrot.lane.b32.xlu0 %v2988, 32
  %v3134 = vpop.permute.xlu0 %3133
  %3135 = vrot.lane.b32.xlu0 %v2989, 32
  %v3136 = vpop.permute.xlu0 %3135
  %3137 = vrot.lane.b32.xlu0 %v2990, 32
  %v3138 = vpop.permute.xlu0 %3137
  %3139 = vrot.lane.b32.xlu0 %v2991, 32
  %v3140 = vpop.permute.xlu0 %3139
  %3141 = vrot.lane.b32.xlu0 %v2992, 32
  %v3142 = vpop.permute.xlu0 %3141
  %3143 = vrot.lane.b32.xlu0 %v2993, 32
  %v3144 = vpop.permute.xlu0 %3143
  %3145 = vrot.lane.b32.xlu0 %v2994, 32
  %v3146 = vpop.permute.xlu0 %3145
  %3147 = vrot.lane.b32.xlu0 %v2995, 32
  %v3148 = vpop.permute.xlu0 %3147
  %3149 = vrot.lane.b32.xlu0 %v2996, 32
  %v3150 = vpop.permute.xlu0 %3149
  %3151 = vrot.lane.b32.xlu0 %v2997, 32
  %v3152 = vpop.permute.xlu0 %3151
  %3153 = vrot.lane.b32.xlu0 %v2998, 32
  %v3154 = vpop.permute.xlu0 %3153
  %3155 = vrot.lane.b32.xlu0 %v2999, 32
  %v3156 = vpop.permute.xlu0 %3155
  %3157 = vrot.lane.b32.xlu0 %v3000, 32
  %v3158 = vpop.permute.xlu0 %3157
  %3159 = vrot.lane.b32.xlu0 %v3001, 32
  %v3160 = vpop.permute.xlu0 %3159
  %3161 = vrot.lane.b32.xlu0 %v3002, 32
  %v3162 = vpop.permute.xlu0 %3161
  %3163 = vrot.lane.b32.xlu0 %v3003, 32
  %v3164 = vpop.permute.xlu0 %3163
  %3165 = vrot.lane.b32.xlu0 %v3004, 32
  %v3166 = vpop.permute.xlu0 %3165
  %3167 = vrot.lane.b32.xlu0 %v3005, 32
  %v3168 = vpop.permute.xlu0 %3167
  %3169 = vrot.lane.b32.xlu0 %v3006, 32
  %v3170 = vpop.permute.xlu0 %3169
  %3171 = vrot.lane.b32.xlu0 %v3007, 32
  %v3172 = vpop.permute.xlu0 %3171
  %3173 = vrot.lane.b32.xlu0 %v3008, 32
  %v3174 = vpop.permute.xlu0 %3173
  %3175 = vrot.lane.b32.xlu0 %v3009, 32
  %v3176 = vpop.permute.xlu0 %3175
  %3177 = vrot.lane.b32.xlu0 %v3010, 32
  %v3178 = vpop.permute.xlu0 %3177
  %3179 = vrot.lane.b32.xlu0 %v3011, 32
  %v3180 = vpop.permute.xlu0 %3179
  %3181 = vrot.lane.b32.xlu0 %v3012, 32
  %v3182 = vpop.permute.xlu0 %3181
  %3183 = vrot.lane.b32.xlu0 %v3013, 32
  %v3184 = vpop.permute.xlu0 %3183
  %3185 = vrot.lane.b32.xlu0 %v3014, 32
  %v3186 = vpop.permute.xlu0 %3185
  %3187 = vrot.lane.b32.xlu0 %v3015, 32
  %v3188 = vpop.permute.xlu0 %3187
  %3189 = vrot.lane.b32.xlu0 %v3016, 32
  %v3190 = vpop.permute.xlu0 %3189
  %3191 = vrot.lane.b32.xlu0 %v3017, 32
  %v3192 = vpop.permute.xlu0 %3191
  %3193 = vrot.lane.b32.xlu0 %v3018, 32
  %v3194 = vpop.permute.xlu0 %3193
  %3195 = vrot.lane.b32.xlu0 %v3019, 32
  %v3196 = vpop.permute.xlu0 %3195
  %3197 = vrot.lane.b32.xlu0 %v3020, 32
  %v3198 = vpop.permute.xlu0 %3197
  %3199 = vrot.lane.b32.xlu0 %v3021, 32
  %v3200 = vpop.permute.xlu0 %3199
  %3201 = vrot.lane.b32.xlu0 %v3022, 32
  %v3202 = vpop.permute.xlu0 %3201
  %3203 = vrot.lane.b32.xlu0 %v3023, 32
  %v3204 = vpop.permute.xlu0 %3203
  %3205 = vrot.lane.b32.xlu0 %v3024, 32
  %v3206 = vpop.permute.xlu0 %3205
  %3207 = vrot.lane.b32.xlu0 %v3025, 32
  %v3208 = vpop.permute.xlu0 %3207
  %3209 = vrot.lane.b32.xlu0 %v3026, 32
  %v3210 = vpop.permute.xlu0 %3209
  %3211 = vrot.lane.b32.xlu0 %v3027, 32
  %v3212 = vpop.permute.xlu0 %3211
  %3213 = vrot.lane.b32.xlu0 %v3028, 32
  %v3214 = vpop.permute.xlu0 %3213
  %3215 = vrot.lane.b32.xlu0 %v3029, 32
  %v3216 = vpop.permute.xlu0 %3215
  %3217 = vrot.lane.b32.xlu0 %v3030, 32
  %v3218 = vpop.permute.xlu0 %3217
  %3219 = vrot.lane.b32.xlu0 %v3031, 32
  %v3220 = vpop.permute.xlu0 %3219
  %3221 = vrot.lane.b32.xlu0 %v3032, 32
  %v3222 = vpop.permute.xlu0 %3221
  %3223 = vrot.lane.b32.xlu0 %v3033, 32
  %v3224 = vpop.permute.xlu0 %3223
  %3225 = vrot.lane.b32.xlu0 %v3034, 32
  %v3226 = vpop.permute.xlu0 %3225
  %v3291 = vmul.f32 %v1692, %v3100
  %v3292 = vmul.f32 %v1694, %v3102
  %v3293 = vmul.f32 %v1696, %v3104
  %v3294 = vmul.f32 %v1698, %v3106
  %v3295 = vmul.f32 %v1700, %v3108
  %v3296 = vmul.f32 %v1702, %v3110
  %v3297 = vmul.f32 %v1704, %v3112
  %v3298 = vmul.f32 %v1706, %v3114
  %v3299 = vmul.f32 %v1708, %v3116
  %v3300 = vmul.f32 %v1710, %v3118
  %v3301 = vmul.f32 %v1712, %v3120
  %v3302 = vmul.f32 %v1714, %v3122
  %v3303 = vmul.f32 %v1716, %v3124
  %v3304 = vmul.f32 %v1718, %v3126
  %v3305 = vmul.f32 %v1720, %v3128
  %v3306 = vmul.f32 %v1722, %v3130
  %v3307 = vmul.f32 %v1724, %v3132
  %v3308 = vmul.f32 %v1726, %v3134
  %v3309 = vmul.f32 %v1728, %v3136
  %v3310 = vmul.f32 %v1730, %v3138
  %v3311 = vmul.f32 %v1732, %v3140
  %v3312 = vmul.f32 %v1734, %v3142
  %v3313 = vmul.f32 %v1736, %v3144
  %v3314 = vmul.f32 %v1738, %v3146
  %v3315 = vmul.f32 %v1740, %v3148
  %v3316 = vmul.f32 %v1742, %v3150
  %v3317 = vmul.f32 %v1744, %v3152
  %v3318 = vmul.f32 %v1746, %v3154
  %v3319 = vmul.f32 %v1748, %v3156
  %v3320 = vmul.f32 %v1750, %v3158
  %v3321 = vmul.f32 %v1752, %v3160
  %v3322 = vmul.f32 %v1754, %v3162
  %v3323 = vmul.f32 %v1756, %v3164
  %v3324 = vmul.f32 %v1758, %v3166
  %v3325 = vmul.f32 %v1760, %v3168
  %v3326 = vmul.f32 %v1762, %v3170
  %v3327 = vmul.f32 %v1764, %v3172
  %v3328 = vmul.f32 %v1766, %v3174
  %v3329 = vmul.f32 %v1768, %v3176
  %v3330 = vmul.f32 %v1770, %v3178
  %v3331 = vmul.f32 %v1772, %v3180
  %v3332 = vmul.f32 %v1774, %v3182
  %v3333 = vmul.f32 %v1776, %v3184
  %v3334 = vmul.f32 %v1778, %v3186
  %v3335 = vmul.f32 %v1780, %v3188
  %v3336 = vmul.f32 %v1782, %v3190
  %v3337 = vmul.f32 %v1784, %v3192
  %v3338 = vmul.f32 %v1786, %v3194
  %v3339 = vmul.f32 %v1788, %v3196
  %v3340 = vmul.f32 %v1790, %v3198
  %v3341 = vmul.f32 %v1792, %v3200
  %v3342 = vmul.f32 %v1794, %v3202
  %v3343 = vmul.f32 %v1796, %v3204
  %v3344 = vmul.f32 %v1798, %v3206
  %v3345 = vmul.f32 %v1800, %v3208
  %v3346 = vmul.f32 %v1802, %v3210
  %v3347 = vmul.f32 %v1804, %v3212
  %v3348 = vmul.f32 %v1806, %v3214
  %v3349 = vmul.f32 %v1808, %v3216
  %v3350 = vmul.f32 %v1810, %v3218
  %v3351 = vmul.f32 %v1812, %v3220
  %v3352 = vmul.f32 %v1814, %v3222
  %v3353 = vmul.f32 %v1816, %v3224
  %v3354 = vmul.f32 %v1818, %v3226
  %3419 = vrot.lane.b32.xlu0 %v3291, 64
  %v3420 = vpop.permute.xlu0 %3419
  %3421 = vrot.lane.b32.xlu0 %v3292, 64
  %v3422 = vpop.permute.xlu0 %3421
  %3423 = vrot.lane.b32.xlu0 %v3293, 64
  %v3424 = vpop.permute.xlu0 %3423
  %3425 = vrot.lane.b32.xlu0 %v3294, 64
  %v3426 = vpop.permute.xlu0 %3425
  %3427 = vrot.lane.b32.xlu0 %v3295, 64
  %v3428 = vpop.permute.xlu0 %3427
  %3429 = vrot.lane.b32.xlu0 %v3296, 64
  %v3430 = vpop.permute.xlu0 %3429
  %3431 = vrot.lane.b32.xlu0 %v3297, 64
  %v3432 = vpop.permute.xlu0 %3431
  %3433 = vrot.lane.b32.xlu0 %v3298, 64
  %v3434 = vpop.permute.xlu0 %3433
  %3435 = vrot.lane.b32.xlu0 %v3299, 64
  %v3436 = vpop.permute.xlu0 %3435
  %3437 = vrot.lane.b32.xlu0 %v3300, 64
  %v3438 = vpop.permute.xlu0 %3437
  %3439 = vrot.lane.b32.xlu0 %v3301, 64
  %v3440 = vpop.permute.xlu0 %3439
  %3441 = vrot.lane.b32.xlu0 %v3302, 64
  %v3442 = vpop.permute.xlu0 %3441
  %3443 = vrot.lane.b32.xlu0 %v3303, 64
  %v3444 = vpop.permute.xlu0 %3443
  %3445 = vrot.lane.b32.xlu0 %v3304, 64
  %v3446 = vpop.permute.xlu0 %3445
  %3447 = vrot.lane.b32.xlu0 %v3305, 64
  %v3448 = vpop.permute.xlu0 %3447
  %3449 = vrot.lane.b32.xlu0 %v3306, 64
  %v3450 = vpop.permute.xlu0 %3449
  %3451 = vrot.lane.b32.xlu0 %v3307, 64
  %v3452 = vpop.permute.xlu0 %3451
  %3453 = vrot.lane.b32.xlu0 %v3308, 64
  %v3454 = vpop.permute.xlu0 %3453
  %3455 = vrot.lane.b32.xlu0 %v3309, 64
  %v3456 = vpop.permute.xlu0 %3455
  %3457 = vrot.lane.b32.xlu0 %v3310, 64
  %v3458 = vpop.permute.xlu0 %3457
  %3459 = vrot.lane.b32.xlu0 %v3311, 64
  %v3460 = vpop.permute.xlu0 %3459
  %3461 = vrot.lane.b32.xlu0 %v3312, 64
  %v3462 = vpop.permute.xlu0 %3461
  %3463 = vrot.lane.b32.xlu0 %v3313, 64
  %v3464 = vpop.permute.xlu0 %3463
  %3465 = vrot.lane.b32.xlu0 %v3314, 64
  %v3466 = vpop.permute.xlu0 %3465
  %3467 = vrot.lane.b32.xlu0 %v3315, 64
  %v3468 = vpop.permute.xlu0 %3467
  %3469 = vrot.lane.b32.xlu0 %v3316, 64
  %v3470 = vpop.permute.xlu0 %3469
  %3471 = vrot.lane.b32.xlu0 %v3317, 64
  %v3472 = vpop.permute.xlu0 %3471
  %3473 = vrot.lane.b32.xlu0 %v3318, 64
  %v3474 = vpop.permute.xlu0 %3473
  %3475 = vrot.lane.b32.xlu0 %v3319, 64
  %v3476 = vpop.permute.xlu0 %3475
  %3477 = vrot.lane.b32.xlu0 %v3320, 64
  %v3478 = vpop.permute.xlu0 %3477
  %3479 = vrot.lane.b32.xlu0 %v3321, 64
  %v3480 = vpop.permute.xlu0 %3479
  %3481 = vrot.lane.b32.xlu0 %v3322, 64
  %v3482 = vpop.permute.xlu0 %3481
  %3483 = vrot.lane.b32.xlu0 %v3323, 64
  %v3484 = vpop.permute.xlu0 %3483
  %3485 = vrot.lane.b32.xlu0 %v3324, 64
  %v3486 = vpop.permute.xlu0 %3485
  %3487 = vrot.lane.b32.xlu0 %v3325, 64
  %v3488 = vpop.permute.xlu0 %3487
  %3489 = vrot.lane.b32.xlu0 %v3326, 64
  %v3490 = vpop.permute.xlu0 %3489
  %3491 = vrot.lane.b32.xlu0 %v3327, 64
  %v3492 = vpop.permute.xlu0 %3491
  %3493 = vrot.lane.b32.xlu0 %v3328, 64
  %v3494 = vpop.permute.xlu0 %3493
  %3495 = vrot.lane.b32.xlu0 %v3329, 64
  %v3496 = vpop.permute.xlu0 %3495
  %3497 = vrot.lane.b32.xlu0 %v3330, 64
  %v3498 = vpop.permute.xlu0 %3497
  %3499 = vrot.lane.b32.xlu0 %v3331, 64
  %v3500 = vpop.permute.xlu0 %3499
  %3501 = vrot.lane.b32.xlu0 %v3332, 64
  %v3502 = vpop.permute.xlu0 %3501
  %3503 = vrot.lane.b32.xlu0 %v3333, 64
  %v3504 = vpop.permute.xlu0 %3503
  %3505 = vrot.lane.b32.xlu0 %v3334, 64
  %v3506 = vpop.permute.xlu0 %3505
  %3507 = vrot.lane.b32.xlu0 %v3335, 64
  %v3508 = vpop.permute.xlu0 %3507
  %3509 = vrot.lane.b32.xlu0 %v3336, 64
  %v3510 = vpop.permute.xlu0 %3509
  %3511 = vrot.lane.b32.xlu0 %v3337, 64
  %v3512 = vpop.permute.xlu0 %3511
  %3513 = vrot.lane.b32.xlu0 %v3338, 64
  %v3514 = vpop.permute.xlu0 %3513
  %3515 = vrot.lane.b32.xlu0 %v3339, 64
  %v3516 = vpop.permute.xlu0 %3515
  %3517 = vrot.lane.b32.xlu0 %v3340, 64
  %v3518 = vpop.permute.xlu0 %3517
  %3519 = vrot.lane.b32.xlu0 %v3341, 64
  %v3520 = vpop.permute.xlu0 %3519
  %3521 = vrot.lane.b32.xlu0 %v3342, 64
  %v3522 = vpop.permute.xlu0 %3521
  %3523 = vrot.lane.b32.xlu0 %v3343, 64
  %v3524 = vpop.permute.xlu0 %3523
  %3525 = vrot.lane.b32.xlu0 %v3344, 64
  %v3526 = vpop.permute.xlu0 %3525
  %3527 = vrot.lane.b32.xlu0 %v3345, 64
  %v3528 = vpop.permute.xlu0 %3527
  %3529 = vrot.lane.b32.xlu0 %v3346, 64
  %v3530 = vpop.permute.xlu0 %3529
  %3531 = vrot.lane.b32.xlu0 %v3347, 64
  %v3532 = vpop.permute.xlu0 %3531
  %3533 = vrot.lane.b32.xlu0 %v3348, 64
  %v3534 = vpop.permute.xlu0 %3533
  %3535 = vrot.lane.b32.xlu0 %v3349, 64
  %v3536 = vpop.permute.xlu0 %3535
  %3537 = vrot.lane.b32.xlu0 %v3350, 64
  %v3538 = vpop.permute.xlu0 %3537
  %3539 = vrot.lane.b32.xlu0 %v3351, 64
  %v3540 = vpop.permute.xlu0 %3539
  %3541 = vrot.lane.b32.xlu0 %v3352, 64
  %v3542 = vpop.permute.xlu0 %3541
  %3543 = vrot.lane.b32.xlu0 %v3353, 64
  %v3544 = vpop.permute.xlu0 %3543
  %3545 = vrot.lane.b32.xlu0 %v3354, 64
  %v3546 = vpop.permute.xlu0 %3545
  %vm3611 = vcmask 261120
  %v3612 = vsel %vm3611, %v3420, %v2907
  %v3613 = vsel %vm3611, %v3422, %v2908
  %v3614 = vsel %vm3611, %v3424, %v2909
  %v3615 = vsel %vm3611, %v3426, %v2910
  %v3616 = vsel %vm3611, %v3428, %v2911
  %v3617 = vsel %vm3611, %v3430, %v2912
  %v3618 = vsel %vm3611, %v3432, %v2913
  %v3619 = vsel %vm3611, %v3434, %v2914
  %v3620 = vsel %vm3611, %v3436, %v2915
  %v3621 = vsel %vm3611, %v3438, %v2916
  %v3622 = vsel %vm3611, %v3440, %v2917
  %v3623 = vsel %vm3611, %v3442, %v2918
  %v3624 = vsel %vm3611, %v3444, %v2919
  %v3625 = vsel %vm3611, %v3446, %v2920
  %v3626 = vsel %vm3611, %v3448, %v2921
  %v3627 = vsel %vm3611, %v3450, %v2922
  %v3628 = vsel %vm3611, %v3452, %v2923
  %v3629 = vsel %vm3611, %v3454, %v2924
  %v3630 = vsel %vm3611, %v3456, %v2925
  %v3631 = vsel %vm3611, %v3458, %v2926
  %v3632 = vsel %vm3611, %v3460, %v2927
  %v3633 = vsel %vm3611, %v3462, %v2928
  %v3634 = vsel %vm3611, %v3464, %v2929
  %v3635 = vsel %vm3611, %v3466, %v2930
  %v3636 = vsel %vm3611, %v3468, %v2931
  %v3637 = vsel %vm3611, %v3470, %v2932
  %v3638 = vsel %vm3611, %v3472, %v2933
  %v3639 = vsel %vm3611, %v3474, %v2934
  %v3640 = vsel %vm3611, %v3476, %v2935
  %v3641 = vsel %vm3611, %v3478, %v2936
  %v3642 = vsel %vm3611, %v3480, %v2937
  %v3643 = vsel %vm3611, %v3482, %v2938
  %v3644 = vsel %vm3611, %v3484, %v2939
  %v3645 = vsel %vm3611, %v3486, %v2940
  %v3646 = vsel %vm3611, %v3488, %v2941
  %v3647 = vsel %vm3611, %v3490, %v2942
  %v3648 = vsel %vm3611, %v3492, %v2943
  %v3649 = vsel %vm3611, %v3494, %v2944
  %v3650 = vsel %vm3611, %v3496, %v2945
  %v3651 = vsel %vm3611, %v3498, %v2946
  %v3652 = vsel %vm3611, %v3500, %v2947
  %v3653 = vsel %vm3611, %v3502, %v2948
  %v3654 = vsel %vm3611, %v3504, %v2949
  %v3655 = vsel %vm3611, %v3506, %v2950
  %v3656 = vsel %vm3611, %v3508, %v2951
  %v3657 = vsel %vm3611, %v3510, %v2952
  %v3658 = vsel %vm3611, %v3512, %v2953
  %v3659 = vsel %vm3611, %v3514, %v2954
  %v3660 = vsel %vm3611, %v3516, %v2955
  %v3661 = vsel %vm3611, %v3518, %v2956
  %v3662 = vsel %vm3611, %v3520, %v2957
  %v3663 = vsel %vm3611, %v3522, %v2958
  %v3664 = vsel %vm3611, %v3524, %v2959
  %v3665 = vsel %vm3611, %v3526, %v2960
  %v3666 = vsel %vm3611, %v3528, %v2961
  %v3667 = vsel %vm3611, %v3530, %v2962
  %v3668 = vsel %vm3611, %v3532, %v2963
  %v3669 = vsel %vm3611, %v3534, %v2964
  %v3670 = vsel %vm3611, %v3536, %v2965
  %v3671 = vsel %vm3611, %v3538, %v2966
  %v3672 = vsel %vm3611, %v3540, %v2967
  %v3673 = vsel %vm3611, %v3542, %v2968
  %v3674 = vsel %vm3611, %v3544, %v2969
  %v3675 = vsel %vm3611, %v3546, %v2970
  %vm3676 = vcmask 523264
  %3677 = vst.msk [vmem:[%s4] sm:$0xff] %vm3676, %v3612
  %3678 = vst.msk [vmem:[%s4 + $0x8] sm:$0xff] %vm3676, %v3613
  %3679 = vst.msk [vmem:[%s4 + $0x10] sm:$0xff] %vm3676, %v3614
  %3680 = vst.msk [vmem:[%s4 + $0x18] sm:$0xff] %vm3676, %v3615
  %3681 = vst.msk [vmem:[%s4 + $0x20] sm:$0xff] %vm3676, %v3616
  %3682 = vst.msk [vmem:[%s4 + $0x28] sm:$0xff] %vm3676, %v3617
  %3683 = vst.msk [vmem:[%s4 + $0x30] sm:$0xff] %vm3676, %v3618
  %3684 = vst.msk [vmem:[%s4 + $0x38] sm:$0xff] %vm3676, %v3619
  %3685 = vst.msk [vmem:[%s4 + $0x40] sm:$0xff] %vm3676, %v3620
  %3686 = vst.msk [vmem:[%s4 + $0x48] sm:$0xff] %vm3676, %v3621
  %3687 = vst.msk [vmem:[%s4 + $0x50] sm:$0xff] %vm3676, %v3622
  %3688 = vst.msk [vmem:[%s4 + $0x58] sm:$0xff] %vm3676, %v3623
  %3689 = vst.msk [vmem:[%s4 + $0x60] sm:$0xff] %vm3676, %v3624
  %3690 = vst.msk [vmem:[%s4 + $0x68] sm:$0xff] %vm3676, %v3625
  %3691 = vst.msk [vmem:[%s4 + $0x70] sm:$0xff] %vm3676, %v3626
  %3692 = vst.msk [vmem:[%s4 + $0x78] sm:$0xff] %vm3676, %v3627
  %3693 = vst.msk [vmem:[%s4 + $0x80] sm:$0xff] %vm3676, %v3628
  %3694 = vst.msk [vmem:[%s4 + $0x88] sm:$0xff] %vm3676, %v3629
  %3695 = vst.msk [vmem:[%s4 + $0x90] sm:$0xff] %vm3676, %v3630
  %3696 = vst.msk [vmem:[%s4 + $0x98] sm:$0xff] %vm3676, %v3631
  %3697 = vst.msk [vmem:[%s4 + $0xa0] sm:$0xff] %vm3676, %v3632
  %3698 = vst.msk [vmem:[%s4 + $0xa8] sm:$0xff] %vm3676, %v3633
  %3699 = vst.msk [vmem:[%s4 + $0xb0] sm:$0xff] %vm3676, %v3634
  %3700 = vst.msk [vmem:[%s4 + $0xb8] sm:$0xff] %vm3676, %v3635
  %3701 = vst.msk [vmem:[%s4 + $0xc0] sm:$0xff] %vm3676, %v3636
  %3702 = vst.msk [vmem:[%s4 + $0xc8] sm:$0xff] %vm3676, %v3637
  %3703 = vst.msk [vmem:[%s4 + $0xd0] sm:$0xff] %vm3676, %v3638
  %3704 = vst.msk [vmem:[%s4 + $0xd8] sm:$0xff] %vm3676, %v3639
  %3705 = vst.msk [vmem:[%s4 + $0xe0] sm:$0xff] %vm3676, %v3640
  %3706 = vst.msk [vmem:[%s4 + $0xe8] sm:$0xff] %vm3676, %v3641
  %3707 = vst.msk [vmem:[%s4 + $0xf0] sm:$0xff] %vm3676, %v3642
  %3708 = vst.msk [vmem:[%s4 + $0xf8] sm:$0xff] %vm3676, %v3643
  %3709 = vst.msk [vmem:[%s4 + $0x100] sm:$0xff] %vm3676, %v3644
  %3710 = vst.msk [vmem:[%s4 + $0x108] sm:$0xff] %vm3676, %v3645
  %3711 = vst.msk [vmem:[%s4 + $0x110] sm:$0xff] %vm3676, %v3646
  %3712 = vst.msk [vmem:[%s4 + $0x118] sm:$0xff] %vm3676, %v3647
  %3713 = vst.msk [vmem:[%s4 + $0x120] sm:$0xff] %vm3676, %v3648
  %3714 = vst.msk [vmem:[%s4 + $0x128] sm:$0xff] %vm3676, %v3649
  %3715 = vst.msk [vmem:[%s4 + $0x130] sm:$0xff] %vm3676, %v3650
  %3716 = vst.msk [vmem:[%s4 + $0x138] sm:$0xff] %vm3676, %v3651
  %3717 = vst.msk [vmem:[%s4 + $0x140] sm:$0xff] %vm3676, %v3652
  %3718 = vst.msk [vmem:[%s4 + $0x148] sm:$0xff] %vm3676, %v3653
  %3719 = vst.msk [vmem:[%s4 + $0x150] sm:$0xff] %vm3676, %v3654
  %3720 = vst.msk [vmem:[%s4 + $0x158] sm:$0xff] %vm3676, %v3655
  %3721 = vst.msk [vmem:[%s4 + $0x160] sm:$0xff] %vm3676, %v3656
  %3722 = vst.msk [vmem:[%s4 + $0x168] sm:$0xff] %vm3676, %v3657
  %3723 = vst.msk [vmem:[%s4 + $0x170] sm:$0xff] %vm3676, %v3658
  %3724 = vst.msk [vmem:[%s4 + $0x178] sm:$0xff] %vm3676, %v3659
  %3725 = vst.msk [vmem:[%s4 + $0x180] sm:$0xff] %vm3676, %v3660
  %3726 = vst.msk [vmem:[%s4 + $0x188] sm:$0xff] %vm3676, %v3661
  %3727 = vst.msk [vmem:[%s4 + $0x190] sm:$0xff] %vm3676, %v3662
  %3728 = vst.msk [vmem:[%s4 + $0x198] sm:$0xff] %vm3676, %v3663
  %3729 = vst.msk [vmem:[%s4 + $0x1a0] sm:$0xff] %vm3676, %v3664
  %3730 = vst.msk [vmem:[%s4 + $0x1a8] sm:$0xff] %vm3676, %v3665
  %3731 = vst.msk [vmem:[%s4 + $0x1b0] sm:$0xff] %vm3676, %v3666
  %3732 = vst.msk [vmem:[%s4 + $0x1b8] sm:$0xff] %vm3676, %v3667
  %3733 = vst.msk [vmem:[%s4 + $0x1c0] sm:$0xff] %vm3676, %v3668
  %3734 = vst.msk [vmem:[%s4 + $0x1c8] sm:$0xff] %vm3676, %v3669
  %3735 = vst.msk [vmem:[%s4 + $0x1d0] sm:$0xff] %vm3676, %v3670
  %3736 = vst.msk [vmem:[%s4 + $0x1d8] sm:$0xff] %vm3676, %v3671
  %3737 = vst.msk [vmem:[%s4 + $0x1e0] sm:$0xff] %vm3676, %v3672
  %3738 = vst.msk [vmem:[%s4 + $0x1e8] sm:$0xff] %vm3676, %v3673
  %3739 = vst.msk [vmem:[%s4 + $0x1f0] sm:$0xff] %vm3676, %v3674
  %3740 = vst.msk [vmem:[%s4 + $0x1f8] sm:$0xff] %vm3676, %v3675
  // Predicated region
  $region18: #{convlstm_cell_forward.1} parent=0 // pred_check
    _
  $region19: #{convlstm_cell_forward.1} parent=0 // pred_check_branch
    %3742 = sbr.rel (0) target = $region21
  $region20: #{convlstm_cell_forward.1} parent=0 // pred_region
    _
  $region21: #{convlstm_cell_forward.1} parent=0 // pred_fallthru
    _
  // Predicated region
  $region22: #{convlstm_cell_forward.1} parent=0 // pred_check
    _
  $region23: #{convlstm_cell_forward.1} parent=0 // pred_check_branch
    %3744 = sbr.rel (0) target = $region25
  $region24: #{convlstm_cell_forward.1} parent=0 // pred_region
    _
  $region25: #{convlstm_cell_forward.1} parent=0 // pred_fallthru
    _

</llo_original>
